<compile_context>
chip_gen: v6e
topology: v6e:2x2x1
jax: 0.10.0
libtpu: 0.0.40
codegen_flags: <defaults>
</compile_context>

<pallas_src>
import functools
import math

import jax
import jax.numpy as jnp
import numpy as np
from jax import lax
from jax.experimental import pallas as pl
from jax.experimental.pallas import tpu as pltpu

PAD = 128  # lane width: per-head output-block padding so slices are tile-aligned


# ----------------------------------------------------------------------------- #
# Fused Pallas kernel: 3 x GNNLayer + adjacency reconstruction
# ----------------------------------------------------------------------------- #
def _encoder_kernel(x_ref, adj_ref, w1_ref, w2_ref, w3_ref, z_ref, zadj_ref,
                    *, layer_dims, n_heads, actives, pad, use_bf16):
    """Whole IGAE_encoder forward in a single kernel invocation.

    w{i}_ref holds layer i's weights pre-transposed, head-concatenated and 128-lane padded:
        shape [D_in_pad, 2 * n_head * pad]
        columns [2h*pad     : 2h*pad + D_out]     = W1 of head h (transposed), rest zero
        columns [(2h+1)*pad : (2h+1)*pad + D_out] = W2 of head h (transposed), rest zero
    """
    mm_dtype = jnp.bfloat16 if use_bf16 else jnp.float32

    bias = adj_ref[...]                     # [N, N] f32 — loaded once, reused everywhere
    bias_mm = bias.astype(mm_dtype)
    seq = x_ref[...]                        # [N, D_in] f32

    for li, w_ref in enumerate((w1_ref, w2_ref, w3_ref)):
        d_out = layer_dims[li]
        n_head = n_heads[li]
        active = actives[li]
        inv_scale = 1.0 / math.sqrt(d_out)

        # One wide MXU pass covering W1 and W2 of ALL heads, then one tanh.
        # Padded columns of w_cat are zero -> tanh(0) = 0 in the padded lanes of fts_all.
        w_cat = w_ref[...]                                       # [D_in_pad, 2*n_head*pad]
        fts_all = jnp.tanh(
            jnp.dot(seq.astype(mm_dtype), w_cat.astype(mm_dtype),
                    preferred_element_type=jnp.float32))

        acc = jnp.zeros((seq.shape[0], pad), jnp.float32)

        for h in range(n_head):                                  # static unroll over heads
            c0 = 2 * h * pad
            fts = fts_all[:, c0:c0 + pad]            # [N, pad] 128-aligned view (free)
            fts2 = fts_all[:, c0 + pad:c0 + 2 * pad]

            # Apply the 1/sqrt(D) scale to the small [N, pad] tensor, not the [N, N] logits.
            fts2s = fts2 * inv_scale

            # logits = (fts2/sqrt(D)) @ fts.T  — contract last dims, no in-kernel transpose.
            # Padded zero columns contribute nothing to the contraction (exact).
            logits = lax.dot_general(
                fts2s.astype(mm_dtype), fts.astype(mm_dtype),
                (((1,), (1,)), ((), ())),
                preferred_element_type=jnp.float32)
            coefs = jnp.exp(logits) * bias                       # [N, N]

            # torch: coefs /= coefs.sum(dim=-1)  -> the [N] sum broadcasts as [1, N],
            # i.e. column j is divided by the row-sum of row j.  Transpose-free form:
            #   (coefs / rowsum^T) @ agg  ==  coefs @ (agg * (1/rowsum)[:, None])
            row_sums = jnp.sum(coefs, axis=-1, keepdims=True)    # [N, 1]
            inv_rows = pl.reciprocal(row_sums, approx=True)      # EUP vrcp
            inv_rows = inv_rows * (2.0 - row_sums * inv_rows)    # one Newton step (~1e-8 rel)

            agg = jnp.tanh(fts) if active else fts               # act applied a 2nd time
            agg = agg * inv_rows                                 # [N, pad], padded cols stay 0

            acc = acc + jnp.dot(coefs.astype(mm_dtype), agg.astype(mm_dtype),
                                preferred_element_type=jnp.float32)

        # Hoisted: one bias @ (.) per layer instead of one per head; 1/n_head hoisted too.
        seq = jnp.dot(bias_mm, acc.astype(mm_dtype),
                      preferred_element_type=jnp.float32) * (1.0 / n_head)  # [N, pad]

    # z_igae (lane-dense 128-wide slab; wrapper slices to D_out) and sigmoid(z @ z.T).
    z_ref[...] = seq
    zz = lax.dot_general(seq.astype(mm_dtype), seq.astype(mm_dtype),
                         (((1,), (1,)), ((), ())),
                         preferred_element_type=jnp.float32)     # padded cols contribute 0
    zadj_ref[...] = jax.nn.sigmoid(zz)


# ----------------------------------------------------------------------------- #
# Host-side weight packing (done ONCE at parameter construction time, not per call)
# ----------------------------------------------------------------------------- #
def _pack_layer_weights(w1s, w2s, d_in_pad, pad=PAD):
    """[n_head, D_out, D_in] x2 -> [d_in_pad, 2*n_head*pad], transposed, interleaved,
    with each head's W1/W2 block zero-padded to `pad` (128) columns so in-kernel slices
    are lane-tile aligned."""
    w1s = np.asarray(w1s, dtype=np.float32)
    w2s = np.asarray(w2s, dtype=np.float32)
    n_head, d_out, d_in = w1s.shape
    out = np.zeros((d_in_pad, 2 * n_head * pad), np.float32)
    for h in range(n_head):
        out[:d_in, 2 * h * pad: 2 * h * pad + d_out] = w1s[h].T
        out[:d_in, (2 * h + 1) * pad: (2 * h + 1) * pad + d_out] = w2s[h].T
    return jnp.asarray(out)


def pack_encoder_params(params, pad=PAD):
    n_input = params["l1_w1"].shape[2]
    w1 = _pack_layer_weights(params["l1_w1"], params["l1_w2"], n_input, pad)
    w2 = _pack_layer_weights(params["l2_w1"], params["l2_w2"], pad, pad)
    w3 = _pack_layer_weights(params["l3_w1"], params["l3_w2"], pad, pad)
    layer_dims = (params["l1_w1"].shape[1],
                  params["l2_w1"].shape[1],
                  params["l3_w1"].shape[1])
    n_heads = (params["l1_w1"].shape[0],
               params["l2_w1"].shape[0],
               params["l3_w1"].shape[0])
    return (w1, w2, w3), layer_dims, n_heads


# ----------------------------------------------------------------------------- #
# Wrapper
# ----------------------------------------------------------------------------- #
def igae_encoder(x, adj, packed_ws, *, layer_dims, n_heads, pad=PAD):
    """IGAE_encoder.forward -> (z_igae, z_igae_adj), fused into one pallas_call."""
    n = x.shape[0]
    actives = (True, True, False)
    d_out3 = layer_dims[2]
    # bf16 MXU operands only pay off at realistic graph sizes (v6e/v7x); toy shapes stay f32.
    use_bf16 = n >= 512

    w1, w2, w3 = packed_ws

    kernel = functools.partial(_encoder_kernel,
                               layer_dims=layer_dims,
                               n_heads=n_heads,
                               actives=actives,
                               pad=pad,
                               use_bf16=use_bf16)

    # Rough resident + transient VMEM footprint -> explicit scoped-VMEM limit with headroom
    # (v5e's default scoped limit is only 16 MiB).
    fbytes = 4 * (x.size + adj.size + w1.size + w2.size + w3.size
                  + n * pad + n * n                  # outputs
                  + 3 * n * n + 4 * n * pad)         # coefs/logits + fts_all/acc transients
    vmem_limit = int(min(max(2 * fbytes, 16 << 20), 96 << 20))

    z_pad, z_igae_adj = pl.pallas_call(
        kernel,
        out_shape=(jax.ShapeDtypeStruct((n, pad), jnp.float32),   # lane-dense z slab
                   jax.ShapeDtypeStruct((n, n), jnp.float32)),
        in_specs=[
            pl.BlockSpec(x.shape, lambda: (0, 0)),
            pl.BlockSpec(adj.shape, lambda: (0, 0)),
            pl.BlockSpec(w1.shape, lambda: (0, 0)),
            pl.BlockSpec(w2.shape, lambda: (0, 0)),
            pl.BlockSpec(w3.shape, lambda: (0, 0)),
        ],
        out_specs=(
            pl.BlockSpec((n, pad), lambda: (0, 0)),
            pl.BlockSpec((n, n), lambda: (0, 0)),
        ),
        grid=(),
        compiler_params=pltpu.CompilerParams(vmem_limit_bytes=vmem_limit),
    )(x, adj, w1, w2, w3)

    return z_pad[:, :d_out3], z_igae_adj


# ----------------------------------------------------------------------------- #
# Deterministic parameter construction (xavier_uniform_, PyTorch fan convention)
# ----------------------------------------------------------------------------- #
def xavier_uniform(key, out_f, in_f):
    bound = math.sqrt(6.0 / (in_f + out_f))
    return jax.random.uniform(key, (out_f, in_f), jnp.float32, -bound, bound)


def make_layer_weights(key, in_f, out_f, n_head):
    keys = jax.random.split(key, 2 * n_head)
    w1 = jnp.stack([xavier_uniform(keys[2 * i], out_f, in_f) for i in range(n_head)])
    w2 = jnp.stack([xavier_uniform(keys[2 * i + 1], out_f, in_f) for i in range(n_head)])
    return w1, w2


# ----------------------------------------------------------------------------- #
# Pure-JAX reference (mirrors the PyTorch code exactly) for a correctness check
# ----------------------------------------------------------------------------- #
def _ref_head(seq, w1, w2, bias, active):
    fts = jnp.tanh(seq @ w1.T)
    fts2 = jnp.tanh(seq @ w2.T)
    logits = (fts2 @ fts.T) / np.sqrt(fts.shape[-1])
    coefs = jnp.exp(logits) * bias
    coefs = coefs / jnp.sum(coefs, axis=-1)       # [N] broadcasts as [1, N], like torch
    if active:
        fts = jnp.tanh(fts)
    return bias @ (coefs @ fts)


def _ref_layer(x, adj, w1s, w2s, active):
    n_head = w1s.shape[0]
    out = jnp.zeros((x.shape[0], w1s.shape[1]), jnp.float32)
    for i in range(n_head):
        out = out + _ref_head(x, w1s[i], w2s[i], adj, active) / n_head
    return out


def _ref_encoder(x, adj, p):
    z = _ref_layer(x, adj, p["l1_w1"], p["l1_w2"], True)
    z = _ref_layer(z, adj, p["l2_w1"], p["l2_w2"], True)
    z_igae = _ref_layer(z, adj, p["l3_w1"], p["l3_w2"], False)
    return z_igae, jax.nn.sigmoid(z_igae @ z_igae.T)


# ----------------------------------------------------------------------------- #
if __name__ == "__main__":
    # Small, forward-consistent shapes.
    N = 16                       # number of graph nodes
    n_input = 32
    gae_n_enc_1, gae_n_enc_2, gae_n_enc_3 = 32, 16, 8
    n_head = (2, 2, 2)

    key = jax.random.PRNGKey(0)
    kx, ka, k1, k2, k3 = jax.random.split(key, 5)

    x = jax.random.normal(kx, (N, n_input), jnp.float32)

    # symmetric, non-negative, self-looped, row-normalised "bias_mat"
    a = jax.random.uniform(ka, (N, N), jnp.float32)
    a = 0.5 * (a + a.T) + jnp.eye(N, dtype=jnp.float32)
    adj = a / jnp.sum(a, axis=-1, keepdims=True)

    params = {}
    params["l1_w1"], params["l1_w2"] = make_layer_weights(k1, n_input, gae_n_enc_1, n_head[0])
    params["l2_w1"], params["l2_w2"] = make_layer_weights(k2, gae_n_enc_1, gae_n_enc_2, n_head[1])
    params["l3_w1"], params["l3_w2"] = make_layer_weights(k3, gae_n_enc_2, gae_n_enc_3, n_head[2])

    # Pack once (host side), jit the forward.
    packed_ws, layer_dims, n_heads = pack_encoder_params(params)
    encoder = jax.jit(functools.partial(igae_encoder, layer_dims=layer_dims, n_heads=n_heads))

    z_igae, z_igae_adj = jax.block_until_ready(encoder(x, adj, packed_ws))

    # sanity check against the pure-JAX reference
    z_ref, zadj_ref = _ref_encoder(x, adj, params)
    np.testing.assert_allclose(np.asarray(z_igae), np.asarray(z_ref), rtol=1e-5, atol=2e-5)
    np.testing.assert_allclose(np.asarray(z_igae_adj), np.asarray(zadj_ref), rtol=1e-5, atol=2e-5)

    assert z_igae.shape == (N, gae_n_enc_3)
    assert z_igae_adj.shape == (N, N)
    print("KERNEL_OK")
</pallas_src>

<mosaic_0001>
module attributes {stable_mosaic.version = 11 : i64} {
  func.func @_encoder_kernel(%arg0: memref<16x32xf32, #tpu.memory_space<vmem>>, %arg1: memref<16x16xf32, #tpu.memory_space<vmem>>, %arg2: memref<32x512xf32, #tpu.memory_space<vmem>>, %arg3: memref<128x512xf32, #tpu.memory_space<vmem>>, %arg4: memref<128x512xf32, #tpu.memory_space<vmem>>, %arg5: memref<16x128xf32, #tpu.memory_space<vmem>>, %arg6: memref<16x16xf32, #tpu.memory_space<vmem>>) attributes {dimension_semantics = [], scalar_prefetch = 0 : i64, scratch_operands = 0 : i64, tpu.core_type = #tpu.core_type<tc>} {
    %c0 = arith.constant 0 : index
    %c0_0 = arith.constant 0 : index
    %0 = vector.load %arg1[%c0, %c0_0] : memref<16x16xf32, #tpu.memory_space<vmem>>, vector<16x16xf32>
    %c0_1 = arith.constant 0 : index
    %c0_2 = arith.constant 0 : index
    %1 = vector.load %arg0[%c0_1, %c0_2] : memref<16x32xf32, #tpu.memory_space<vmem>>, vector<16x32xf32>
    %c0_3 = arith.constant 0 : index
    %c0_4 = arith.constant 0 : index
    %2 = vector.load %arg2[%c0_3, %c0_4] : memref<32x512xf32, #tpu.memory_space<vmem>>, vector<32x512xf32>
    %cst = arith.constant dense<0.000000e+00> : vector<16x512xf32>
    %3 = tpu.matmul %1, %2, %cst {dimension_numbers = #tpu.dot_dimension_numbers<[1], [0], [0], [1], [0, 0, 1, 1], [], []>} : vector<16x32xf32>, vector<32x512xf32>, vector<16x512xf32> -> vector<16x512xf32>
    %4 = math.tanh %3 : vector<16x512xf32>
    %cst_5 = arith.constant 0.000000e+00 : f32
    %5 = vector.broadcast %cst_5 : f32 to vector<16x128xf32>
    %6 = vector.extract_strided_slice %4 {offsets = [0, 0], sizes = [16, 128], strides = [1, 1]} : vector<16x512xf32> to vector<16x128xf32>
    %7 = vector.extract_strided_slice %4 {offsets = [0, 128], sizes = [16, 128], strides = [1, 1]} : vector<16x512xf32> to vector<16x128xf32>
    %cst_6 = arith.constant 0.176776692 : f32
    %8 = vector.broadcast %cst_6 : f32 to vector<16x128xf32>
    %9 = arith.mulf %7, %8 : vector<16x128xf32>
    %cst_7 = arith.constant dense<0.000000e+00> : vector<16x16xf32>
    %10 = tpu.matmul %9, %6, %cst_7 {dimension_numbers = #tpu.dot_dimension_numbers<[1], [1], [0], [0], [0, 0, 1, 0], [], []>} : vector<16x128xf32>, vector<16x128xf32>, vector<16x16xf32> -> vector<16x16xf32>
    %11 = math.exp %10 : vector<16x16xf32>
    %12 = arith.mulf %11, %0 : vector<16x16xf32>
    %cst_8 = arith.constant dense<0.000000e+00> : vector<16xf32>
    %13 = vector.multi_reduction <add>, %12, %cst_8 [1] : vector<16x16xf32> to vector<16xf32>
    %14 = vector.shape_cast %13 : vector<16xf32> to vector<16x1xf32>
    %15 = tpu.reciprocal %14 {approx = true} : vector<16x1xf32> -> vector<16x1xf32>
    %16 = arith.mulf %14, %15 : vector<16x1xf32>
    %cst_9 = arith.constant 2.000000e+00 : f32
    %17 = vector.broadcast %cst_9 : f32 to vector<16x1xf32>
    %18 = arith.subf %17, %16 : vector<16x1xf32>
    %19 = arith.mulf %15, %18 : vector<16x1xf32>
    %20 = math.tanh %6 : vector<16x128xf32>
    %21 = vector.broadcast %19 : vector<16x1xf32> to vector<16x128xf32>
    %22 = arith.mulf %20, %21 : vector<16x128xf32>
    %cst_10 = arith.constant dense<0.000000e+00> : vector<16x128xf32>
    %23 = tpu.matmul %12, %22, %cst_10 {dimension_numbers = #tpu.dot_dimension_numbers<[1], [0], [0], [1], [0, 0, 1, 1], [], []>} : vector<16x16xf32>, vector<16x128xf32>, vector<16x128xf32> -> vector<16x128xf32>
    %24 = arith.addf %5, %23 : vector<16x128xf32>
    %25 = vector.extract_strided_slice %4 {offsets = [0, 256], sizes = [16, 128], strides = [1, 1]} : vector<16x512xf32> to vector<16x128xf32>
    %26 = vector.extract_strided_slice %4 {offsets = [0, 384], sizes = [16, 128], strides = [1, 1]} : vector<16x512xf32> to vector<16x128xf32>
    %cst_11 = arith.constant 0.176776692 : f32
    %27 = vector.broadcast %cst_11 : f32 to vector<16x128xf32>
    %28 = arith.mulf %26, %27 : vector<16x128xf32>
    %cst_12 = arith.constant dense<0.000000e+00> : vector<16x16xf32>
    %29 = tpu.matmul %28, %25, %cst_12 {dimension_numbers = #tpu.dot_dimension_numbers<[1], [1], [0], [0], [0, 0, 1, 0], [], []>} : vector<16x128xf32>, vector<16x128xf32>, vector<16x16xf32> -> vector<16x16xf32>
    %30 = math.exp %29 : vector<16x16xf32>
    %31 = arith.mulf %30, %0 : vector<16x16xf32>
    %cst_13 = arith.constant dense<0.000000e+00> : vector<16xf32>
    %32 = vector.multi_reduction <add>, %31, %cst_13 [1] : vector<16x16xf32> to vector<16xf32>
    %33 = vector.shape_cast %32 : vector<16xf32> to vector<16x1xf32>
    %34 = tpu.reciprocal %33 {approx = true} : vector<16x1xf32> -> vector<16x1xf32>
    %35 = arith.mulf %33, %34 : vector<16x1xf32>
    %cst_14 = arith.constant 2.000000e+00 : f32
    %36 = vector.broadcast %cst_14 : f32 to vector<16x1xf32>
    %37 = arith.subf %36, %35 : vector<16x1xf32>
    %38 = arith.mulf %34, %37 : vector<16x1xf32>
    %39 = math.tanh %25 : vector<16x128xf32>
    %40 = vector.broadcast %38 : vector<16x1xf32> to vector<16x128xf32>
    %41 = arith.mulf %39, %40 : vector<16x128xf32>
    %cst_15 = arith.constant dense<0.000000e+00> : vector<16x128xf32>
    %42 = tpu.matmul %31, %41, %cst_15 {dimension_numbers = #tpu.dot_dimension_numbers<[1], [0], [0], [1], [0, 0, 1, 1], [], []>} : vector<16x16xf32>, vector<16x128xf32>, vector<16x128xf32> -> vector<16x128xf32>
    %43 = arith.addf %24, %42 : vector<16x128xf32>
    %cst_16 = arith.constant dense<0.000000e+00> : vector<16x128xf32>
    %44 = tpu.matmul %0, %43, %cst_16 {dimension_numbers = #tpu.dot_dimension_numbers<[1], [0], [0], [1], [0, 0, 1, 1], [], []>} : vector<16x16xf32>, vector<16x128xf32>, vector<16x128xf32> -> vector<16x128xf32>
    %cst_17 = arith.constant 5.000000e-01 : f32
    %45 = vector.broadcast %cst_17 : f32 to vector<16x128xf32>
    %46 = arith.mulf %44, %45 : vector<16x128xf32>
    %c0_18 = arith.constant 0 : index
    %c0_19 = arith.constant 0 : index
    %47 = vector.load %arg3[%c0_18, %c0_19] : memref<128x512xf32, #tpu.memory_space<vmem>>, vector<128x512xf32>
    %cst_20 = arith.constant dense<0.000000e+00> : vector<16x512xf32>
    %48 = tpu.matmul %46, %47, %cst_20 {dimension_numbers = #tpu.dot_dimension_numbers<[1], [0], [0], [1], [0, 0, 1, 1], [], []>} : vector<16x128xf32>, vector<128x512xf32>, vector<16x512xf32> -> vector<16x512xf32>
    %49 = math.tanh %48 : vector<16x512xf32>
    %cst_21 = arith.constant 0.000000e+00 : f32
    %50 = vector.broadcast %cst_21 : f32 to vector<16x128xf32>
    %51 = vector.extract_strided_slice %49 {offsets = [0, 0], sizes = [16, 128], strides = [1, 1]} : vector<16x512xf32> to vector<16x128xf32>
    %52 = vector.extract_strided_slice %49 {offsets = [0, 128], sizes = [16, 128], strides = [1, 1]} : vector<16x512xf32> to vector<16x128xf32>
    %cst_22 = arith.constant 2.500000e-01 : f32
    %53 = vector.broadcast %cst_22 : f32 to vector<16x128xf32>
    %54 = arith.mulf %52, %53 : vector<16x128xf32>
    %cst_23 = arith.constant dense<0.000000e+00> : vector<16x16xf32>
    %55 = tpu.matmul %54, %51, %cst_23 {dimension_numbers = #tpu.dot_dimension_numbers<[1], [1], [0], [0], [0, 0, 1, 0], [], []>} : vector<16x128xf32>, vector<16x128xf32>, vector<16x16xf32> -> vector<16x16xf32>
    %56 = math.exp %55 : vector<16x16xf32>
    %57 = arith.mulf %56, %0 : vector<16x16xf32>
    %cst_24 = arith.constant dense<0.000000e+00> : vector<16xf32>
    %58 = vector.multi_reduction <add>, %57, %cst_24 [1] : vector<16x16xf32> to vector<16xf32>
    %59 = vector.shape_cast %58 : vector<16xf32> to vector<16x1xf32>
    %60 = tpu.reciprocal %59 {approx = true} : vector<16x1xf32> -> vector<16x1xf32>
    %61 = arith.mulf %59, %60 : vector<16x1xf32>
    %cst_25 = arith.constant 2.000000e+00 : f32
    %62 = vector.broadcast %cst_25 : f32 to vector<16x1xf32>
    %63 = arith.subf %62, %61 : vector<16x1xf32>
    %64 = arith.mulf %60, %63 : vector<16x1xf32>
    %65 = math.tanh %51 : vector<16x128xf32>
    %66 = vector.broadcast %64 : vector<16x1xf32> to vector<16x128xf32>
    %67 = arith.mulf %65, %66 : vector<16x128xf32>
    %cst_26 = arith.constant dense<0.000000e+00> : vector<16x128xf32>
    %68 = tpu.matmul %57, %67, %cst_26 {dimension_numbers = #tpu.dot_dimension_numbers<[1], [0], [0], [1], [0, 0, 1, 1], [], []>} : vector<16x16xf32>, vector<16x128xf32>, vector<16x128xf32> -> vector<16x128xf32>
    %69 = arith.addf %50, %68 : vector<16x128xf32>
    %70 = vector.extract_strided_slice %49 {offsets = [0, 256], sizes = [16, 128], strides = [1, 1]} : vector<16x512xf32> to vector<16x128xf32>
    %71 = vector.extract_strided_slice %49 {offsets = [0, 384], sizes = [16, 128], strides = [1, 1]} : vector<16x512xf32> to vector<16x128xf32>
    %cst_27 = arith.constant 2.500000e-01 : f32
    %72 = vector.broadcast %cst_27 : f32 to vector<16x128xf32>
    %73 = arith.mulf %71, %72 : vector<16x128xf32>
    %cst_28 = arith.constant dense<0.000000e+00> : vector<16x16xf32>
    %74 = tpu.matmul %73, %70, %cst_28 {dimension_numbers = #tpu.dot_dimension_numbers<[1], [1], [0], [0], [0, 0, 1, 0], [], []>} : vector<16x128xf32>, vector<16x128xf32>, vector<16x16xf32> -> vector<16x16xf32>
    %75 = math.exp %74 : vector<16x16xf32>
    %76 = arith.mulf %75, %0 : vector<16x16xf32>
    %cst_29 = arith.constant dense<0.000000e+00> : vector<16xf32>
    %77 = vector.multi_reduction <add>, %76, %cst_29 [1] : vector<16x16xf32> to vector<16xf32>
    %78 = vector.shape_cast %77 : vector<16xf32> to vector<16x1xf32>
    %79 = tpu.reciprocal %78 {approx = true} : vector<16x1xf32> -> vector<16x1xf32>
    %80 = arith.mulf %78, %79 : vector<16x1xf32>
    %cst_30 = arith.constant 2.000000e+00 : f32
    %81 = vector.broadcast %cst_30 : f32 to vector<16x1xf32>
    %82 = arith.subf %81, %80 : vector<16x1xf32>
    %83 = arith.mulf %79, %82 : vector<16x1xf32>
    %84 = math.tanh %70 : vector<16x128xf32>
    %85 = vector.broadcast %83 : vector<16x1xf32> to vector<16x128xf32>
    %86 = arith.mulf %84, %85 : vector<16x128xf32>
    %cst_31 = arith.constant dense<0.000000e+00> : vector<16x128xf32>
    %87 = tpu.matmul %76, %86, %cst_31 {dimension_numbers = #tpu.dot_dimension_numbers<[1], [0], [0], [1], [0, 0, 1, 1], [], []>} : vector<16x16xf32>, vector<16x128xf32>, vector<16x128xf32> -> vector<16x128xf32>
    %88 = arith.addf %69, %87 : vector<16x128xf32>
    %cst_32 = arith.constant dense<0.000000e+00> : vector<16x128xf32>
    %89 = tpu.matmul %0, %88, %cst_32 {dimension_numbers = #tpu.dot_dimension_numbers<[1], [0], [0], [1], [0, 0, 1, 1], [], []>} : vector<16x16xf32>, vector<16x128xf32>, vector<16x128xf32> -> vector<16x128xf32>
    %cst_33 = arith.constant 5.000000e-01 : f32
    %90 = vector.broadcast %cst_33 : f32 to vector<16x128xf32>
    %91 = arith.mulf %89, %90 : vector<16x128xf32>
    %c0_34 = arith.constant 0 : index
    %c0_35 = arith.constant 0 : index
    %92 = vector.load %arg4[%c0_34, %c0_35] : memref<128x512xf32, #tpu.memory_space<vmem>>, vector<128x512xf32>
    %cst_36 = arith.constant dense<0.000000e+00> : vector<16x512xf32>
    %93 = tpu.matmul %91, %92, %cst_36 {dimension_numbers = #tpu.dot_dimension_numbers<[1], [0], [0], [1], [0, 0, 1, 1], [], []>} : vector<16x128xf32>, vector<128x512xf32>, vector<16x512xf32> -> vector<16x512xf32>
    %94 = math.tanh %93 : vector<16x512xf32>
    %cst_37 = arith.constant 0.000000e+00 : f32
    %95 = vector.broadcast %cst_37 : f32 to vector<16x128xf32>
    %96 = vector.extract_strided_slice %94 {offsets = [0, 0], sizes = [16, 128], strides = [1, 1]} : vector<16x512xf32> to vector<16x128xf32>
    %97 = vector.extract_strided_slice %94 {offsets = [0, 128], sizes = [16, 128], strides = [1, 1]} : vector<16x512xf32> to vector<16x128xf32>
    %cst_38 = arith.constant 0.353553385 : f32
    %98 = vector.broadcast %cst_38 : f32 to vector<16x128xf32>
    %99 = arith.mulf %97, %98 : vector<16x128xf32>
    %cst_39 = arith.constant dense<0.000000e+00> : vector<16x16xf32>
    %100 = tpu.matmul %99, %96, %cst_39 {dimension_numbers = #tpu.dot_dimension_numbers<[1], [1], [0], [0], [0, 0, 1, 0], [], []>} : vector<16x128xf32>, vector<16x128xf32>, vector<16x16xf32> -> vector<16x16xf32>
    %101 = math.exp %100 : vector<16x16xf32>
    %102 = arith.mulf %101, %0 : vector<16x16xf32>
    %cst_40 = arith.constant dense<0.000000e+00> : vector<16xf32>
    %103 = vector.multi_reduction <add>, %102, %cst_40 [1] : vector<16x16xf32> to vector<16xf32>
    %104 = vector.shape_cast %103 : vector<16xf32> to vector<16x1xf32>
    %105 = tpu.reciprocal %104 {approx = true} : vector<16x1xf32> -> vector<16x1xf32>
    %106 = arith.mulf %104, %105 : vector<16x1xf32>
    %cst_41 = arith.constant 2.000000e+00 : f32
    %107 = vector.broadcast %cst_41 : f32 to vector<16x1xf32>
    %108 = arith.subf %107, %106 : vector<16x1xf32>
    %109 = arith.mulf %105, %108 : vector<16x1xf32>
    %110 = vector.broadcast %109 : vector<16x1xf32> to vector<16x128xf32>
    %111 = arith.mulf %96, %110 : vector<16x128xf32>
    %cst_42 = arith.constant dense<0.000000e+00> : vector<16x128xf32>
    %112 = tpu.matmul %102, %111, %cst_42 {dimension_numbers = #tpu.dot_dimension_numbers<[1], [0], [0], [1], [0, 0, 1, 1], [], []>} : vector<16x16xf32>, vector<16x128xf32>, vector<16x128xf32> -> vector<16x128xf32>
    %113 = arith.addf %95, %112 : vector<16x128xf32>
    %114 = vector.extract_strided_slice %94 {offsets = [0, 256], sizes = [16, 128], strides = [1, 1]} : vector<16x512xf32> to vector<16x128xf32>
    %115 = vector.extract_strided_slice %94 {offsets = [0, 384], sizes = [16, 128], strides = [1, 1]} : vector<16x512xf32> to vector<16x128xf32>
    %cst_43 = arith.constant 0.353553385 : f32
    %116 = vector.broadcast %cst_43 : f32 to vector<16x128xf32>
    %117 = arith.mulf %115, %116 : vector<16x128xf32>
    %cst_44 = arith.constant dense<0.000000e+00> : vector<16x16xf32>
    %118 = tpu.matmul %117, %114, %cst_44 {dimension_numbers = #tpu.dot_dimension_numbers<[1], [1], [0], [0], [0, 0, 1, 0], [], []>} : vector<16x128xf32>, vector<16x128xf32>, vector<16x16xf32> -> vector<16x16xf32>
    %119 = math.exp %118 : vector<16x16xf32>
    %120 = arith.mulf %119, %0 : vector<16x16xf32>
    %cst_45 = arith.constant dense<0.000000e+00> : vector<16xf32>
    %121 = vector.multi_reduction <add>, %120, %cst_45 [1] : vector<16x16xf32> to vector<16xf32>
    %122 = vector.shape_cast %121 : vector<16xf32> to vector<16x1xf32>
    %123 = tpu.reciprocal %122 {approx = true} : vector<16x1xf32> -> vector<16x1xf32>
    %124 = arith.mulf %122, %123 : vector<16x1xf32>
    %cst_46 = arith.constant 2.000000e+00 : f32
    %125 = vector.broadcast %cst_46 : f32 to vector<16x1xf32>
    %126 = arith.subf %125, %124 : vector<16x1xf32>
    %127 = arith.mulf %123, %126 : vector<16x1xf32>
    %128 = vector.broadcast %127 : vector<16x1xf32> to vector<16x128xf32>
    %129 = arith.mulf %114, %128 : vector<16x128xf32>
    %cst_47 = arith.constant dense<0.000000e+00> : vector<16x128xf32>
    %130 = tpu.matmul %120, %129, %cst_47 {dimension_numbers = #tpu.dot_dimension_numbers<[1], [0], [0], [1], [0, 0, 1, 1], [], []>} : vector<16x16xf32>, vector<16x128xf32>, vector<16x128xf32> -> vector<16x128xf32>
    %131 = arith.addf %113, %130 : vector<16x128xf32>
    %cst_48 = arith.constant dense<0.000000e+00> : vector<16x128xf32>
    %132 = tpu.matmul %0, %131, %cst_48 {dimension_numbers = #tpu.dot_dimension_numbers<[1], [0], [0], [1], [0, 0, 1, 1], [], []>} : vector<16x16xf32>, vector<16x128xf32>, vector<16x128xf32> -> vector<16x128xf32>
    %cst_49 = arith.constant 5.000000e-01 : f32
    %133 = vector.broadcast %cst_49 : f32 to vector<16x128xf32>
    %134 = arith.mulf %132, %133 : vector<16x128xf32>
    %c0_50 = arith.constant 0 : index
    %c0_51 = arith.constant 0 : index
    %135 = vector.load %arg5[%c0_50, %c0_51] : memref<16x128xf32, #tpu.memory_space<vmem>>, vector<16x128xf32>
    tpu.vector_store %arg5[%c0_50, %c0_51], %134 {strides = array<i32>} : memref<16x128xf32, #tpu.memory_space<vmem>>, vector<16x128xf32>,
    %cst_52 = arith.constant dense<0.000000e+00> : vector<16x16xf32>
    %136 = tpu.matmul %134, %134, %cst_52 {dimension_numbers = #tpu.dot_dimension_numbers<[1], [1], [0], [0], [0, 0, 1, 0], [], []>} : vector<16x128xf32>, vector<16x128xf32>, vector<16x16xf32> -> vector<16x16xf32>
    %137 = arith.negf %136 : vector<16x16xf32>
    %138 = math.exp %137 : vector<16x16xf32>
    %cst_53 = arith.constant 1.000000e+00 : f32
    %139 = vector.broadcast %cst_53 : f32 to vector<16x16xf32>
    %140 = arith.addf %139, %138 : vector<16x16xf32>
    %141 = arith.divf %139, %140 : vector<16x16xf32>
    %c0_54 = arith.constant 0 : index
    %c0_55 = arith.constant 0 : index
    %142 = vector.load %arg6[%c0_54, %c0_55] : memref<16x16xf32, #tpu.memory_space<vmem>>, vector<16x16xf32>
    tpu.vector_store %arg6[%c0_54, %c0_55], %141 {strides = array<i32>} : memref<16x16xf32, #tpu.memory_space<vmem>>, vector<16x16xf32>,
    return
  }
}

</mosaic_0001>

<llo_original>
// kernel: igae_encoder.1
$region0: #{igae_encoder.1}
  #allocation0 [shape = 'u32[]', space=smem, size = 0x4, offset = 0x4, fixed_abs, tag = 'smem constant byte address 0x4 - core index']
  #allocation1 [shape = 'u32[144,128]{1,0:T(1,128)}', space=vmem, size = 0x12000, scoped, tag = 'internal scratch']
  %s0 = inlined_call_operand.hbm [shape: f32[16,32], index: 0, kind: input, shape index: {}]
  %s1 = inlined_call_operand.hbm [shape: f32[16,16], index: 1, kind: input, shape index: {}]
  %s2 = inlined_call_operand.hbm [shape: f32[32,512], index: 2, kind: input, shape index: {}]
  %s3 = inlined_call_operand.hbm [shape: f32[128,512], index: 3, kind: input, shape index: {}]
  %s4 = inlined_call_operand.hbm [shape: f32[128,512], index: 4, kind: input, shape index: {}]
  %s5 = inlined_call_operand.vmem [shape: f32[16,128], index: 5, kind: output, shape index: {0}]
  %s6 = inlined_call_operand.hbm [shape: f32[16,16], index: 6, kind: output, shape index: {1}]
  %7 = xla_tuple %s5, %s6
  %s8 = sld [smem:[#allocation0]]
  $region58: #{igae_encoder.1} parent=0
    _
  %s10 = ssub.s32 1, %s8
  %s11 = scalar_select 0, %s10, %s8
  $region1: #{igae_encoder.1} parent=0
    #allocation2 [shape = 'u8[8192]{0}', space=vmem, size = 0x2000, scoped, tag = 'input window, operand 0, single buffered']
    #allocation3 [shape = 's32[1]{0}', space=sflag, size = 0x4, scoped, tag = 'scoped memory for igae_encoder.1']
    #allocation4 [shape = 's32[1]{0}', space=sflag, size = 0x4, scoped, tag = 'scoped memory for igae_encoder.1']
    #allocation5 [shape = 'u8[8192]{0}', space=vmem, size = 0x2000, scoped, tag = 'input window, operand 1, single buffered']
    #allocation6 [shape = 's32[1]{0}', space=sflag, size = 0x4, scoped, tag = 'scoped memory for igae_encoder.1']
    #allocation7 [shape = 'u8[65536]{0}', space=vmem, size = 0x10000, scoped, tag = 'input window, operand 2, single buffered']
    #allocation8 [shape = 'u8[262144]{0}', space=vmem, size = 0x40000, scoped, tag = 'input window, operand 3, single buffered']
    #allocation9 [shape = 's32[1]{0}', space=sflag, size = 0x4, scoped, tag = 'scoped memory for igae_encoder.1']
    #allocation10 [shape = 'u8[262144]{0}', space=vmem, size = 0x40000, scoped, tag = 'input window, operand 4, single buffered']
    #allocation11 [shape = 'u8[8192]{0}', space=vmem, size = 0x2000, scoped, tag = 'output window, operand 1, single buffered']
    %12 = vsyncpa [#allocation3], 0
    %13 = vsyncpa [#allocation6], 0
    %14 = vsyncpa [#allocation9], 0
    %15 = vsyncpa [#allocation4], 0
    // Predicated region
    $region2: #{igae_encoder.1} parent=1 // pred_check
      _
    $region3: #{igae_encoder.1} parent=1 // pred_check_branch
      %17 = sbr.rel (0) target = $region5
    $region4: #{igae_encoder.1} parent=1 // pred_region
      %s19 = ssub.s32 256, 256
      %20 = vsyncadd [#allocation3], %s19
      %s21 = sshll.u32 [#allocation2], 4
      %s22 = int_to_ptr.vmem [resolvable:$true] %s21
      %27 = dma.hbm_to_vmem [thread:$0]  %s0, 256, %s22, [#allocation3], 128, 128, 8
    $region5: #{igae_encoder.1} parent=1 // pred_fallthru
      _
    // Predicated region
    $region6: #{igae_encoder.1} parent=1 // pred_check
      _
    $region7: #{igae_encoder.1} parent=1 // pred_check_branch
      %29 = sbr.rel (0) target = $region9
    $region8: #{igae_encoder.1} parent=1 // pred_region
      %s31 = ssub.s32 256, 256
      %32 = vsyncadd [#allocation6], %s31
      %s33 = sshll.u32 [#allocation5], 4
      %s34 = int_to_ptr.vmem [resolvable:$true] %s33
      %39 = dma.hbm_to_vmem [thread:$0]  %s1, 256, %s34, [#allocation6], 128, 128, 8
    $region9: #{igae_encoder.1} parent=1 // pred_fallthru
      _
    // Predicated region
    $region10: #{igae_encoder.1} parent=1 // pred_check
      _
    $region11: #{igae_encoder.1} parent=1 // pred_check_branch
      %41 = sbr.rel (0) target = $region13
    $region12: #{igae_encoder.1} parent=1 // pred_region
      %s43 = ssub.s32 2048, 2048
      %44 = vsyncadd [#allocation6], %s43
      %s45 = sshll.u32 [#allocation7], 4
      %s46 = int_to_ptr.vmem [resolvable:$true] %s45
      %51 = dma.hbm_to_vmem [thread:$0]  %s2, 2048, %s46, [#allocation6], 512, 512, 32
    $region13: #{igae_encoder.1} parent=1 // pred_fallthru
      _
    // Predicated region
    $region14: #{igae_encoder.1} parent=1 // pred_check
      _
    $region15: #{igae_encoder.1} parent=1 // pred_check_branch
      %53 = sbr.rel (0) target = $region17
    $region16: #{igae_encoder.1} parent=1 // pred_region
      %s55 = ssub.s32 8192, 8192
      %56 = vsyncadd [#allocation9], %s55
      %s57 = sshll.u32 [#allocation8], 4
      %s58 = int_to_ptr.vmem [resolvable:$true] %s57
      %63 = dma.hbm_to_vmem [thread:$0]  %s3, 8192, %s58, [#allocation9], 512, 512, 32
    $region17: #{igae_encoder.1} parent=1 // pred_fallthru
      _
    // Predicated region
    $region18: #{igae_encoder.1} parent=1 // pred_check
      _
    $region19: #{igae_encoder.1} parent=1 // pred_check_branch
      %65 = sbr.rel (0) target = $region21
    $region20: #{igae_encoder.1} parent=1 // pred_region
      %s67 = ssub.s32 8192, 8192
      %68 = vsyncadd [#allocation9], %s67
      %s69 = sshll.u32 [#allocation10], 4
      %s70 = int_to_ptr.vmem [resolvable:$true] %s69
      %75 = dma.hbm_to_vmem [thread:$0]  %s4, 8192, %s70, [#allocation9], 512, 512, 32
    $region21: #{igae_encoder.1} parent=1 // pred_fallthru
      _
    // Predicated region
    $region22: #{igae_encoder.1} parent=1 // pred_check
      _
    $region23: #{igae_encoder.1} parent=1 // pred_check_branch
      %77 = sbr.rel (0) target = $region25
    $region24: #{igae_encoder.1} parent=1 // pred_region
      %78 = dma.done [#allocation3], 256
    $region25: #{igae_encoder.1} parent=1 // pred_fallthru
      _
    // Predicated region
    $region26: #{igae_encoder.1} parent=1 // pred_check
      _
    $region27: #{igae_encoder.1} parent=1 // pred_check_branch
      %80 = sbr.rel (0) target = $region29
    $region28: #{igae_encoder.1} parent=1 // pred_region
      %81 = dma.done [#allocation6], 256
    $region29: #{igae_encoder.1} parent=1 // pred_fallthru
      _
    // Predicated region
    $region30: #{igae_encoder.1} parent=1 // pred_check
      _
    $region31: #{igae_encoder.1} parent=1 // pred_check_branch
      %83 = sbr.rel (0) target = $region33
    $region32: #{igae_encoder.1} parent=1 // pred_region
      %84 = dma.done [#allocation6], 2048
    $region33: #{igae_encoder.1} parent=1 // pred_fallthru
      _
    // Predicated region
    $region34: #{igae_encoder.1} parent=1 // pred_check
      _
    $region35: #{igae_encoder.1} parent=1 // pred_check_branch
      %86 = sbr.rel (0) target = $region37
    $region36: #{igae_encoder.1} parent=1 // pred_region
      %87 = dma.done [#allocation9], 8192
    $region37: #{igae_encoder.1} parent=1 // pred_fallthru
      _
    // Predicated region
    $region38: #{igae_encoder.1} parent=1 // pred_check
      _
    $region39: #{igae_encoder.1} parent=1 // pred_check_branch
      %89 = sbr.rel (0) target = $region41
    $region40: #{igae_encoder.1} parent=1 // pred_region
      %90 = dma.done [#allocation9], 8192
    $region41: #{igae_encoder.1} parent=1 // pred_fallthru
      _
    %v91 = vld [vmem:[#allocation5] sm:$0xff]
    %v92 = vld [vmem:[#allocation5 + $0x8] sm:$0xff]
    %v93 = vld [vmem:[#allocation2] sm:$0xff]
    %v94 = vld [vmem:[#allocation2 + $0x8] sm:$0xff]
    %v95 = vld [vmem:[#allocation7] sm:$0xff]
    %v96 = vld [vmem:[#allocation7 + $0x8] sm:$0xff]
    %v97 = vld [vmem:[#allocation7 + $0x10] sm:$0xff]
    %v98 = vld [vmem:[#allocation7 + $0x18] sm:$0xff]
    %v99 = vld [vmem:[#allocation7 + $0x20] sm:$0xff]
    %v100 = vld [vmem:[#allocation7 + $0x28] sm:$0xff]
    %v101 = vld [vmem:[#allocation7 + $0x30] sm:$0xff]
    %v102 = vld [vmem:[#allocation7 + $0x38] sm:$0xff]
    %v103 = vld [vmem:[#allocation7 + $0x40] sm:$0xff]
    %v104 = vld [vmem:[#allocation7 + $0x48] sm:$0xff]
    %v105 = vld [vmem:[#allocation7 + $0x50] sm:$0xff]
    %v106 = vld [vmem:[#allocation7 + $0x58] sm:$0xff]
    %v107 = vld [vmem:[#allocation7 + $0x60] sm:$0xff]
    %v108 = vld [vmem:[#allocation7 + $0x68] sm:$0xff]
    %v109 = vld [vmem:[#allocation7 + $0x70] sm:$0xff]
    %v110 = vld [vmem:[#allocation7 + $0x78] sm:$0xff]
    %vm111 = vcmask 261120
    %v113 = vsel %vm111, %v93, 0
    %v116 = vsel %vm111, %v94, 0
    %118 = vmatprep.subr.mxu0 0.0
    %119 = vmatpush1.msra.mxu0 0.0
    %120 = vmatprep.subr.mxu0 0.0
    %121 = vmatpush1.msra.mxu0 0.0
    %122 = vmatprep.subr.mxu0 0.0
    %123 = vmatpush1.msra.mxu0 0.0
    %124 = vmatprep.subr.mxu0 0.0
    %125 = vmatpush1.msra.mxu0 0.0
    %126 = vmatprep.subr.mxu0 0.0
    %127 = vmatpush1.msra.mxu0 0.0
    %128 = vmatprep.subr.mxu0 0.0
    %129 = vmatpush1.msra.mxu0 0.0
    %130 = vmatprep.subr.mxu0 0.0
    %131 = vmatpush1.msra.mxu0 0.0
    %132 = vmatprep.subr.mxu0 0.0
    %133 = vmatpush1.msra.mxu0 0.0
    %134 = vmatprep.subr.mxu0 0.0
    %135 = vmatpush1.msra.mxu0 0.0
    %136 = vmatprep.subr.mxu0 0.0
    %137 = vmatpush1.msra.mxu0 0.0
    %138 = vmatprep.subr.mxu0 0.0
    %139 = vmatpush1.msra.mxu0 0.0
    %140 = vmatprep.subr.mxu0 0.0
    %141 = vmatpush1.msra.mxu0 0.0
    %142 = vmatprep.subr.mxu0 %v108
    %143 = vmatpush1.msra.mxu0 %v107
    %144 = vmatprep.subr.mxu0 %v104
    %145 = vmatpush1.msra.mxu0 %v103
    %146 = vmatprep.subr.mxu0 %v100
    %147 = vmatpush1.msra.mxu0 %v99
    %148 = vmatprep.subr.mxu0 %v96
    %149 = vmatpush1.msra.mxu0 %v95
    %150 = vmatprep.subr.mxu0 0.0
    %151 = vmatpush2.msra.mxu0 0.0
    %152 = vmatprep.subr.mxu0 0.0
    %153 = vmatpush2.msra.mxu0 0.0
    %154 = vmatprep.subr.mxu0 0.0
    %155 = vmatpush2.msra.mxu0 0.0
    %156 = vmatprep.subr.mxu0 0.0
    %157 = vmatpush2.msra.mxu0 0.0
    %158 = vmatprep.subr.mxu0 0.0
    %159 = vmatpush2.msra.mxu0 0.0
    %160 = vmatprep.subr.mxu0 0.0
    %161 = vmatpush2.msra.mxu0 0.0
    %162 = vmatprep.subr.mxu0 0.0
    %163 = vmatpush2.msra.mxu0 0.0
    %164 = vmatprep.subr.mxu0 0.0
    %165 = vmatpush2.msra.mxu0 0.0
    %166 = vmatprep.subr.mxu0 0.0
    %167 = vmatpush2.msra.mxu0 0.0
    %168 = vmatprep.subr.mxu0 0.0
    %169 = vmatpush2.msra.mxu0 0.0
    %170 = vmatprep.subr.mxu0 0.0
    %171 = vmatpush2.msra.mxu0 0.0
    %172 = vmatprep.subr.mxu0 0.0
    %173 = vmatpush2.msra.mxu0 0.0
    %174 = vmatprep.subr.mxu0 0.0
    %175 = vmatpush2.msra.mxu0 0.0
    %176 = vmatprep.subr.mxu0 0.0
    %177 = vmatpush2.msra.mxu0 0.0
    %178 = vmatprep.subr.mxu0 0.0
    %179 = vmatpush2.msra.mxu0 0.0
    %180 = vmatprep.subr.mxu0 0.0
    %181 = vmatpush2.msra.mxu0 0.0
    %182 = vmatprep.mubr.f32.mxu0 0.0
    %183 = vmatmul.mubr.f32.gmra.mxu0 %v113
    %v184 = vpop.f32.mrf.mxu0
    %v185 = vadd.f32 0.0, %v184
    %v186 = vpop.f32.mrf.mxu0
    %v187 = vadd.f32 0.0, %v186
    %188 = vmatprep.mubr.f32.mxu0 0.0
    %189 = vmatmul.mubr.f32.gmra.mxu0 %v116
    %v190 = vpop.f32.mrf.mxu0
    %v191 = vadd.f32 0.0, %v190
    %v192 = vpop.f32.mrf.mxu0
    %v193 = vadd.f32 0.0, %v192
    %194 = vdwg.mxu0
    %195 = vmatprep.subr.mxu0 0.0
    %196 = vmatpush1.msra.mxu0 0.0
    %197 = vmatprep.subr.mxu0 0.0
    %198 = vmatpush1.msra.mxu0 0.0
    %199 = vmatprep.subr.mxu0 0.0
    %200 = vmatpush1.msra.mxu0 0.0
    %201 = vmatprep.subr.mxu0 0.0
    %202 = vmatpush1.msra.mxu0 0.0
    %203 = vmatprep.subr.mxu0 0.0
    %204 = vmatpush1.msra.mxu0 0.0
    %205 = vmatprep.subr.mxu0 0.0
    %206 = vmatpush1.msra.mxu0 0.0
    %207 = vmatprep.subr.mxu0 0.0
    %208 = vmatpush1.msra.mxu0 0.0
    %209 = vmatprep.subr.mxu0 0.0
    %210 = vmatpush1.msra.mxu0 0.0
    %211 = vmatprep.subr.mxu0 0.0
    %212 = vmatpush1.msra.mxu0 0.0
    %213 = vmatprep.subr.mxu0 0.0
    %214 = vmatpush1.msra.mxu0 0.0
    %215 = vmatprep.subr.mxu0 0.0
    %216 = vmatpush1.msra.mxu0 0.0
    %217 = vmatprep.subr.mxu0 0.0
    %218 = vmatpush1.msra.mxu0 0.0
    %219 = vmatprep.subr.mxu0 %v110
    %220 = vmatpush1.msra.mxu0 %v109
    %221 = vmatprep.subr.mxu0 %v106
    %222 = vmatpush1.msra.mxu0 %v105
    %223 = vmatprep.subr.mxu0 %v102
    %224 = vmatpush1.msra.mxu0 %v101
    %225 = vmatprep.subr.mxu0 %v98
    %226 = vmatpush1.msra.mxu0 %v97
    %227 = vmatprep.subr.mxu0 0.0
    %228 = vmatpush2.msra.mxu0 0.0
    %229 = vmatprep.subr.mxu0 0.0
    %230 = vmatpush2.msra.mxu0 0.0
    %231 = vmatprep.subr.mxu0 0.0
    %232 = vmatpush2.msra.mxu0 0.0
    %233 = vmatprep.subr.mxu0 0.0
    %234 = vmatpush2.msra.mxu0 0.0
    %235 = vmatprep.subr.mxu0 0.0
    %236 = vmatpush2.msra.mxu0 0.0
    %237 = vmatprep.subr.mxu0 0.0
    %238 = vmatpush2.msra.mxu0 0.0
    %239 = vmatprep.subr.mxu0 0.0
    %240 = vmatpush2.msra.mxu0 0.0
    %241 = vmatprep.subr.mxu0 0.0
    %242 = vmatpush2.msra.mxu0 0.0
    %243 = vmatprep.subr.mxu0 0.0
    %244 = vmatpush2.msra.mxu0 0.0
    %245 = vmatprep.subr.mxu0 0.0
    %246 = vmatpush2.msra.mxu0 0.0
    %247 = vmatprep.subr.mxu0 0.0
    %248 = vmatpush2.msra.mxu0 0.0
    %249 = vmatprep.subr.mxu0 0.0
    %250 = vmatpush2.msra.mxu0 0.0
    %251 = vmatprep.subr.mxu0 0.0
    %252 = vmatpush2.msra.mxu0 0.0
    %253 = vmatprep.subr.mxu0 0.0
    %254 = vmatpush2.msra.mxu0 0.0
    %255 = vmatprep.subr.mxu0 0.0
    %256 = vmatpush2.msra.mxu0 0.0
    %257 = vmatprep.subr.mxu0 0.0
    %258 = vmatpush2.msra.mxu0 0.0
    %259 = vmatprep.mubr.f32.mxu0 0.0
    %260 = vmatmul.mubr.f32.gmra.mxu0 %v113
    %v261 = vpop.f32.mrf.mxu0
    %v262 = vadd.f32 0.0, %v261
    %v263 = vpop.f32.mrf.mxu0
    %v264 = vadd.f32 0.0, %v263
    %265 = vmatprep.mubr.f32.mxu0 0.0
    %266 = vmatmul.mubr.f32.gmra.mxu0 %v116
    %v267 = vpop.f32.mrf.mxu0
    %v268 = vadd.f32 0.0, %v267
    %v269 = vpop.f32.mrf.mxu0
    %v270 = vadd.f32 0.0, %v269
    %271 = vdwg.mxu0
    %v272 = vtanh.pop %v185
    %v273 = vtanh.pop %v187
    %v274 = vtanh.pop %v262
    %v275 = vtanh.pop %v264
    %v276 = vtanh.pop %v191
    %v277 = vtanh.pop %v193
    %v278 = vtanh.pop %v268
    %v279 = vtanh.pop %v270
    %v280 = vmul.f32 %v273, 0.17677669
    %v281 = vmul.f32 %v277, 0.17677669
    %282 = vmatprep.subr.mxu0 0.0
    %283 = vmatpush1.xpose.msra.mxu0 0.0
    %284 = vmatprep.subr.mxu0 0.0
    %285 = vmatpush1.xpose.msra.mxu0 0.0
    %286 = vmatprep.subr.mxu0 0.0
    %287 = vmatpush1.xpose.msra.mxu0 0.0
    %288 = vmatprep.subr.mxu0 0.0
    %289 = vmatpush1.xpose.msra.mxu0 0.0
    %290 = vmatprep.subr.mxu0 0.0
    %291 = vmatpush1.xpose.msra.mxu0 0.0
    %292 = vmatprep.subr.mxu0 0.0
    %293 = vmatpush1.xpose.msra.mxu0 0.0
    %294 = vmatprep.subr.mxu0 0.0
    %295 = vmatpush1.xpose.msra.mxu0 0.0
    %296 = vmatprep.subr.mxu0 0.0
    %297 = vmatpush1.xpose.msra.mxu0 0.0
    %298 = vmatprep.subr.mxu0 0.0
    %299 = vmatpush1.xpose.msra.mxu0 0.0
    %300 = vmatprep.subr.mxu0 0.0
    %301 = vmatpush1.xpose.msra.mxu0 0.0
    %302 = vmatprep.subr.mxu0 0.0
    %303 = vmatpush1.xpose.msra.mxu0 0.0
    %304 = vmatprep.subr.mxu0 0.0
    %305 = vmatpush1.xpose.msra.mxu0 0.0
    %306 = vmatprep.subr.mxu0 0.0
    %307 = vmatpush1.xpose.msra.mxu0 0.0
    %308 = vmatprep.subr.mxu0 0.0
    %309 = vmatpush1.xpose.msra.mxu0 0.0
    %310 = vmatprep.subr.mxu0 0.0
    %311 = vmatpush1.xpose.msra.mxu0 %v276
    %312 = vmatprep.subr.mxu0 0.0
    %313 = vmatpush1.xpose.msra.mxu0 %v272
    %314 = vmatprep.subr.mxu0 0.0
    %315 = vmatpush2.xpose.msra.mxu0 0.0
    %316 = vmatprep.subr.mxu0 0.0
    %317 = vmatpush2.xpose.msra.mxu0 0.0
    %318 = vmatprep.subr.mxu0 0.0
    %319 = vmatpush2.xpose.msra.mxu0 0.0
    %320 = vmatprep.subr.mxu0 0.0
    %321 = vmatpush2.xpose.msra.mxu0 0.0
    %322 = vmatprep.subr.mxu0 0.0
    %323 = vmatpush2.xpose.msra.mxu0 0.0
    %324 = vmatprep.subr.mxu0 0.0
    %325 = vmatpush2.xpose.msra.mxu0 0.0
    %326 = vmatprep.subr.mxu0 0.0
    %327 = vmatpush2.xpose.msra.mxu0 0.0
    %328 = vmatprep.subr.mxu0 0.0
    %329 = vmatpush2.xpose.msra.mxu0 0.0
    %330 = vmatprep.subr.mxu0 0.0
    %331 = vmatpush2.xpose.msra.mxu0 0.0
    %332 = vmatprep.subr.mxu0 0.0
    %333 = vmatpush2.xpose.msra.mxu0 0.0
    %334 = vmatprep.subr.mxu0 0.0
    %335 = vmatpush2.xpose.msra.mxu0 0.0
    %336 = vmatprep.subr.mxu0 0.0
    %337 = vmatpush2.xpose.msra.mxu0 0.0
    %338 = vmatprep.subr.mxu0 0.0
    %339 = vmatpush2.xpose.msra.mxu0 0.0
    %340 = vmatprep.subr.mxu0 0.0
    %341 = vmatpush2.xpose.msra.mxu0 0.0
    %342 = vmatprep.subr.mxu0 0.0
    %343 = vmatpush2.xpose.msra.mxu0 0.0
    %344 = vmatprep.subr.mxu0 0.0
    %345 = vmatpush2.xpose.msra.mxu0 0.0
    %346 = vmatprep.mubr.f32.mxu0 0.0
    %347 = vmatmul.mubr.f32.gmra.mxu0 %v280
    %v348 = vpop.f32.mrf.mxu0
    %v349 = vadd.f32 0.0, %v348
    %v350 = vpop.f32.mrf.mxu0
    %351 = vmatprep.mubr.f32.mxu0 0.0
    %352 = vmatmul.mubr.f32.gmra.mxu0 %v281
    %v353 = vpop.f32.mrf.mxu0
    %v354 = vadd.f32 0.0, %v353
    %v355 = vpop.f32.mrf.mxu0
    %356 = vdwg.mxu0
    %v357 = vmul.f32 %v349, 1.442695
    %v358 = vpow.pop %v357
    %v359 = vmul.f32 %v354, 1.442695
    %v360 = vpow.pop %v359
    %v361 = vmul.f32 %v358, %v91
    %v362 = vmul.f32 %v360, %v92
    %vm363 = vcmask 130048
    %v364 = vsel %vm363, %v361, 0.0
    %365 = vadd.xlane.f32.xlu0 %v364
    %v366 = vpop.xlane.xlu0 %365
    %v367 = vsel %vm363, %v362, 0.0
    %368 = vadd.xlane.f32.xlu0 %v367
    %v369 = vpop.xlane.xlu0 %368
    %v370 = vrcp.pop %v366
    %v371 = vrcp.pop %v369
    %v372 = vmul.f32 %v366, %v370
    %v373 = vmul.f32 %v369, %v371
    %v374 = vsub.f32 2.0, %v372
    %v375 = vsub.f32 2.0, %v373
    %v376 = vmul.f32 %v370, %v374
    %v377 = vmul.f32 %v371, %v375
    %v378 = vtanh.pop %v272
    %v379 = vtanh.pop %v276
    %v380 = vmul.f32 %v378, %v376
    %v381 = vmul.f32 %v379, %v377
    %v382 = vmul.f32 %v275, 0.17677669
    %v383 = vmul.f32 %v279, 0.17677669
    %384 = vmatprep.subr.mxu0 0.0
    %385 = vmatpush1.xpose.msra.mxu0 0.0
    %386 = vmatprep.subr.mxu0 0.0
    %387 = vmatpush1.xpose.msra.mxu0 0.0
    %388 = vmatprep.subr.mxu0 0.0
    %389 = vmatpush1.xpose.msra.mxu0 0.0
    %390 = vmatprep.subr.mxu0 0.0
    %391 = vmatpush1.xpose.msra.mxu0 0.0
    %392 = vmatprep.subr.mxu0 0.0
    %393 = vmatpush1.xpose.msra.mxu0 0.0
    %394 = vmatprep.subr.mxu0 0.0
    %395 = vmatpush1.xpose.msra.mxu0 0.0
    %396 = vmatprep.subr.mxu0 0.0
    %397 = vmatpush1.xpose.msra.mxu0 0.0
    %398 = vmatprep.subr.mxu0 0.0
    %399 = vmatpush1.xpose.msra.mxu0 0.0
    %400 = vmatprep.subr.mxu0 0.0
    %401 = vmatpush1.xpose.msra.mxu0 0.0
    %402 = vmatprep.subr.mxu0 0.0
    %403 = vmatpush1.xpose.msra.mxu0 0.0
    %404 = vmatprep.subr.mxu0 0.0
    %405 = vmatpush1.xpose.msra.mxu0 0.0
    %406 = vmatprep.subr.mxu0 0.0
    %407 = vmatpush1.xpose.msra.mxu0 0.0
    %408 = vmatprep.subr.mxu0 0.0
    %409 = vmatpush1.xpose.msra.mxu0 0.0
    %410 = vmatprep.subr.mxu0 0.0
    %411 = vmatpush1.xpose.msra.mxu0 0.0
    %412 = vmatprep.subr.mxu0 0.0
    %413 = vmatpush1.xpose.msra.mxu0 %v278
    %414 = vmatprep.subr.mxu0 0.0
    %415 = vmatpush1.xpose.msra.mxu0 %v274
    %416 = vmatprep.subr.mxu0 0.0
    %417 = vmatpush2.xpose.msra.mxu0 0.0
    %418 = vmatprep.subr.mxu0 0.0
    %419 = vmatpush2.xpose.msra.mxu0 0.0
    %420 = vmatprep.subr.mxu0 0.0
    %421 = vmatpush2.xpose.msra.mxu0 0.0
    %422 = vmatprep.subr.mxu0 0.0
    %423 = vmatpush2.xpose.msra.mxu0 0.0
    %424 = vmatprep.subr.mxu0 0.0
    %425 = vmatpush2.xpose.msra.mxu0 0.0
    %426 = vmatprep.subr.mxu0 0.0
    %427 = vmatpush2.xpose.msra.mxu0 0.0
    %428 = vmatprep.subr.mxu0 0.0
    %429 = vmatpush2.xpose.msra.mxu0 0.0
    %430 = vmatprep.subr.mxu0 0.0
    %431 = vmatpush2.xpose.msra.mxu0 0.0
    %432 = vmatprep.subr.mxu0 0.0
    %433 = vmatpush2.xpose.msra.mxu0 0.0
    %434 = vmatprep.subr.mxu0 0.0
    %435 = vmatpush2.xpose.msra.mxu0 0.0
    %436 = vmatprep.subr.mxu0 0.0
    %437 = vmatpush2.xpose.msra.mxu0 0.0
    %438 = vmatprep.subr.mxu0 0.0
    %439 = vmatpush2.xpose.msra.mxu0 0.0
    %440 = vmatprep.subr.mxu0 0.0
    %441 = vmatpush2.xpose.msra.mxu0 0.0
    %442 = vmatprep.subr.mxu0 0.0
    %443 = vmatpush2.xpose.msra.mxu0 0.0
    %444 = vmatprep.subr.mxu0 0.0
    %445 = vmatpush2.xpose.msra.mxu0 0.0
    %446 = vmatprep.subr.mxu0 0.0
    %447 = vmatpush2.xpose.msra.mxu0 0.0
    %448 = vmatprep.mubr.f32.mxu0 0.0
    %449 = vmatmul.mubr.f32.gmra.mxu0 %v382
    %v450 = vpop.f32.mrf.mxu0
    %v451 = vadd.f32 0.0, %v450
    %v452 = vpop.f32.mrf.mxu0
    %453 = vmatprep.mubr.f32.mxu0 0.0
    %454 = vmatmul.mubr.f32.gmra.mxu0 %v383
    %v455 = vpop.f32.mrf.mxu0
    %v456 = vadd.f32 0.0, %v455
    %v457 = vpop.f32.mrf.mxu0
    %458 = vdwg.mxu0
    %v459 = vmul.f32 %v451, 1.442695
    %v460 = vpow.pop %v459
    %v461 = vmul.f32 %v456, 1.442695
    %v462 = vpow.pop %v461
    %v463 = vmul.f32 %v460, %v91
    %v464 = vmul.f32 %v462, %v92
    %v465 = vsel %vm363, %v463, 0.0
    %466 = vadd.xlane.f32.xlu0 %v465
    %v467 = vpop.xlane.xlu0 %466
    %v468 = vsel %vm363, %v464, 0.0
    %469 = vadd.xlane.f32.xlu0 %v468
    %v470 = vpop.xlane.xlu0 %469
    %v471 = vrcp.pop %v467
    %v472 = vrcp.pop %v470
    %v473 = vmul.f32 %v467, %v471
    %v474 = vmul.f32 %v470, %v472
    %v475 = vsub.f32 2.0, %v473
    %v476 = vsub.f32 2.0, %v474
    %v477 = vmul.f32 %v471, %v475
    %v478 = vmul.f32 %v472, %v476
    %v479 = vtanh.pop %v274
    %v480 = vtanh.pop %v278
    %v481 = vmul.f32 %v479, %v477
    %v482 = vmul.f32 %v480, %v478
    %v484 = vsel %vm363, %v463, 0
    %v487 = vsel %vm363, %v464, 0
    %489 = vmatprep.subr.mxu0 0.0
    %490 = vmatpush1.msra.mxu0 0.0
    %491 = vmatprep.subr.mxu0 0.0
    %492 = vmatpush1.msra.mxu0 0.0
    %493 = vmatprep.subr.mxu0 0.0
    %494 = vmatpush1.msra.mxu0 0.0
    %495 = vmatprep.subr.mxu0 0.0
    %496 = vmatpush1.msra.mxu0 0.0
    %497 = vmatprep.subr.mxu0 0.0
    %498 = vmatpush1.msra.mxu0 0.0
    %499 = vmatprep.subr.mxu0 0.0
    %500 = vmatpush1.msra.mxu0 0.0
    %501 = vmatprep.subr.mxu0 0.0
    %502 = vmatpush1.msra.mxu0 0.0
    %503 = vmatprep.subr.mxu0 0.0
    %504 = vmatpush1.msra.mxu0 0.0
    %505 = vmatprep.subr.mxu0 0.0
    %506 = vmatpush1.msra.mxu0 0.0
    %507 = vmatprep.subr.mxu0 0.0
    %508 = vmatpush1.msra.mxu0 0.0
    %509 = vmatprep.subr.mxu0 0.0
    %510 = vmatpush1.msra.mxu0 0.0
    %511 = vmatprep.subr.mxu0 0.0
    %512 = vmatpush1.msra.mxu0 0.0
    %513 = vmatprep.subr.mxu0 0.0
    %514 = vmatpush1.msra.mxu0 0.0
    %515 = vmatprep.subr.mxu0 0.0
    %516 = vmatpush1.msra.mxu0 0.0
    %517 = vmatprep.subr.mxu0 0.0
    %518 = vmatpush1.msra.mxu0 %v482
    %519 = vmatprep.subr.mxu0 0.0
    %520 = vmatpush1.msra.mxu0 %v481
    %521 = vmatprep.subr.mxu0 0.0
    %522 = vmatpush2.msra.mxu0 0.0
    %523 = vmatprep.subr.mxu0 0.0
    %524 = vmatpush2.msra.mxu0 0.0
    %525 = vmatprep.subr.mxu0 0.0
    %526 = vmatpush2.msra.mxu0 0.0
    %527 = vmatprep.subr.mxu0 0.0
    %528 = vmatpush2.msra.mxu0 0.0
    %529 = vmatprep.subr.mxu0 0.0
    %530 = vmatpush2.msra.mxu0 0.0
    %531 = vmatprep.subr.mxu0 0.0
    %532 = vmatpush2.msra.mxu0 0.0
    %533 = vmatprep.subr.mxu0 0.0
    %534 = vmatpush2.msra.mxu0 0.0
    %535 = vmatprep.subr.mxu0 0.0
    %536 = vmatpush2.msra.mxu0 0.0
    %537 = vmatprep.subr.mxu0 0.0
    %538 = vmatpush2.msra.mxu0 0.0
    %539 = vmatprep.subr.mxu0 0.0
    %540 = vmatpush2.msra.mxu0 0.0
    %541 = vmatprep.subr.mxu0 0.0
    %542 = vmatpush2.msra.mxu0 0.0
    %543 = vmatprep.subr.mxu0 0.0
    %544 = vmatpush2.msra.mxu0 0.0
    %545 = vmatprep.subr.mxu0 0.0
    %546 = vmatpush2.msra.mxu0 0.0
    %547 = vmatprep.subr.mxu0 0.0
    %548 = vmatpush2.msra.mxu0 0.0
    %549 = vmatprep.subr.mxu0 0.0
    %550 = vmatpush2.msra.mxu0 0.0
    %551 = vmatprep.subr.mxu0 0.0
    %552 = vmatpush2.msra.mxu0 0.0
    %553 = vmatprep.mubr.f32.mxu0 0.0
    %554 = vmatmul.mubr.f32.gmra.mxu0 %v484
    %v555 = vpop.f32.mrf.mxu0
    %v556 = vadd.f32 0.0, %v555
    %v557 = vpop.f32.mrf.mxu0
    %558 = vmatprep.mubr.f32.mxu0 0.0
    %559 = vmatmul.mubr.f32.gmra.mxu0 %v487
    %v560 = vpop.f32.mrf.mxu0
    %v561 = vadd.f32 0.0, %v560
    %v562 = vpop.f32.mrf.mxu0
    %563 = vdwg.mxu0
    %v565 = vsel %vm363, %v361, 0
    %v568 = vsel %vm363, %v362, 0
    %570 = vmatprep.subr.mxu0 0.0
    %571 = vmatpush1.msra.mxu0 0.0
    %572 = vmatprep.subr.mxu0 0.0
    %573 = vmatpush1.msra.mxu0 0.0
    %574 = vmatprep.subr.mxu0 0.0
    %575 = vmatpush1.msra.mxu0 0.0
    %576 = vmatprep.subr.mxu0 0.0
    %577 = vmatpush1.msra.mxu0 0.0
    %578 = vmatprep.subr.mxu0 0.0
    %579 = vmatpush1.msra.mxu0 0.0
    %580 = vmatprep.subr.mxu0 0.0
    %581 = vmatpush1.msra.mxu0 0.0
    %582 = vmatprep.subr.mxu0 0.0
    %583 = vmatpush1.msra.mxu0 0.0
    %584 = vmatprep.subr.mxu0 0.0
    %585 = vmatpush1.msra.mxu0 0.0
    %586 = vmatprep.subr.mxu0 0.0
    %587 = vmatpush1.msra.mxu0 0.0
    %588 = vmatprep.subr.mxu0 0.0
    %589 = vmatpush1.msra.mxu0 0.0
    %590 = vmatprep.subr.mxu0 0.0
    %591 = vmatpush1.msra.mxu0 0.0
    %592 = vmatprep.subr.mxu0 0.0
    %593 = vmatpush1.msra.mxu0 0.0
    %594 = vmatprep.subr.mxu0 0.0
    %595 = vmatpush1.msra.mxu0 0.0
    %596 = vmatprep.subr.mxu0 0.0
    %597 = vmatpush1.msra.mxu0 0.0
    %598 = vmatprep.subr.mxu0 0.0
    %599 = vmatpush1.msra.mxu0 %v381
    %600 = vmatprep.subr.mxu0 0.0
    %601 = vmatpush1.msra.mxu0 %v380
    %602 = vmatprep.subr.mxu0 0.0
    %603 = vmatpush2.msra.mxu0 0.0
    %604 = vmatprep.subr.mxu0 0.0
    %605 = vmatpush2.msra.mxu0 0.0
    %606 = vmatprep.subr.mxu0 0.0
    %607 = vmatpush2.msra.mxu0 0.0
    %608 = vmatprep.subr.mxu0 0.0
    %609 = vmatpush2.msra.mxu0 0.0
    %610 = vmatprep.subr.mxu0 0.0
    %611 = vmatpush2.msra.mxu0 0.0
    %612 = vmatprep.subr.mxu0 0.0
    %613 = vmatpush2.msra.mxu0 0.0
    %614 = vmatprep.subr.mxu0 0.0
    %615 = vmatpush2.msra.mxu0 0.0
    %616 = vmatprep.subr.mxu0 0.0
    %617 = vmatpush2.msra.mxu0 0.0
    %618 = vmatprep.subr.mxu0 0.0
    %619 = vmatpush2.msra.mxu0 0.0
    %620 = vmatprep.subr.mxu0 0.0
    %621 = vmatpush2.msra.mxu0 0.0
    %622 = vmatprep.subr.mxu0 0.0
    %623 = vmatpush2.msra.mxu0 0.0
    %624 = vmatprep.subr.mxu0 0.0
    %625 = vmatpush2.msra.mxu0 0.0
    %626 = vmatprep.subr.mxu0 0.0
    %627 = vmatpush2.msra.mxu0 0.0
    %628 = vmatprep.subr.mxu0 0.0
    %629 = vmatpush2.msra.mxu0 0.0
    %630 = vmatprep.subr.mxu0 0.0
    %631 = vmatpush2.msra.mxu0 0.0
    %632 = vmatprep.subr.mxu0 0.0
    %633 = vmatpush2.msra.mxu0 0.0
    %634 = vmatprep.mubr.f32.mxu0 0.0
    %635 = vmatmul.mubr.f32.gmra.mxu0 %v565
    %v636 = vpop.f32.mrf.mxu0
    %v637 = vadd.f32 %v556, %v636
    %v638 = vpop.f32.mrf.mxu0
    %639 = vmatprep.mubr.f32.mxu0 0.0
    %640 = vmatmul.mubr.f32.gmra.mxu0 %v568
    %v641 = vpop.f32.mrf.mxu0
    %v642 = vadd.f32 %v561, %v641
    %v643 = vpop.f32.mrf.mxu0
    %644 = vdwg.mxu0
    %v646 = vsel %vm363, %v91, 0
    %v649 = vsel %vm363, %v92, 0
    %651 = vmatprep.subr.mxu0 0.0
    %652 = vmatpush1.msra.mxu0 0.0
    %653 = vmatprep.subr.mxu0 0.0
    %654 = vmatpush1.msra.mxu0 0.0
    %655 = vmatprep.subr.mxu0 0.0
    %656 = vmatpush1.msra.mxu0 0.0
    %657 = vmatprep.subr.mxu0 0.0
    %658 = vmatpush1.msra.mxu0 0.0
    %659 = vmatprep.subr.mxu0 0.0
    %660 = vmatpush1.msra.mxu0 0.0
    %661 = vmatprep.subr.mxu0 0.0
    %662 = vmatpush1.msra.mxu0 0.0
    %663 = vmatprep.subr.mxu0 0.0
    %664 = vmatpush1.msra.mxu0 0.0
    %665 = vmatprep.subr.mxu0 0.0
    %666 = vmatpush1.msra.mxu0 0.0
    %667 = vmatprep.subr.mxu0 0.0
    %668 = vmatpush1.msra.mxu0 0.0
    %669 = vmatprep.subr.mxu0 0.0
    %670 = vmatpush1.msra.mxu0 0.0
    %671 = vmatprep.subr.mxu0 0.0
    %672 = vmatpush1.msra.mxu0 0.0
    %673 = vmatprep.subr.mxu0 0.0
    %674 = vmatpush1.msra.mxu0 0.0
    %675 = vmatprep.subr.mxu0 0.0
    %676 = vmatpush1.msra.mxu0 0.0
    %677 = vmatprep.subr.mxu0 0.0
    %678 = vmatpush1.msra.mxu0 0.0
    %679 = vmatprep.subr.mxu0 0.0
    %680 = vmatpush1.msra.mxu0 %v642
    %681 = vmatprep.subr.mxu0 0.0
    %682 = vmatpush1.msra.mxu0 %v637
    %683 = vmatprep.subr.mxu0 0.0
    %684 = vmatpush2.msra.mxu0 0.0
    %685 = vmatprep.subr.mxu0 0.0
    %686 = vmatpush2.msra.mxu0 0.0
    %687 = vmatprep.subr.mxu0 0.0
    %688 = vmatpush2.msra.mxu0 0.0
    %689 = vmatprep.subr.mxu0 0.0
    %690 = vmatpush2.msra.mxu0 0.0
    %691 = vmatprep.subr.mxu0 0.0
    %692 = vmatpush2.msra.mxu0 0.0
    %693 = vmatprep.subr.mxu0 0.0
    %694 = vmatpush2.msra.mxu0 0.0
    %695 = vmatprep.subr.mxu0 0.0
    %696 = vmatpush2.msra.mxu0 0.0
    %697 = vmatprep.subr.mxu0 0.0
    %698 = vmatpush2.msra.mxu0 0.0
    %699 = vmatprep.subr.mxu0 0.0
    %700 = vmatpush2.msra.mxu0 0.0
    %701 = vmatprep.subr.mxu0 0.0
    %702 = vmatpush2.msra.mxu0 0.0
    %703 = vmatprep.subr.mxu0 0.0
    %704 = vmatpush2.msra.mxu0 0.0
    %705 = vmatprep.subr.mxu0 0.0
    %706 = vmatpush2.msra.mxu0 0.0
    %707 = vmatprep.subr.mxu0 0.0
    %708 = vmatpush2.msra.mxu0 0.0
    %709 = vmatprep.subr.mxu0 0.0
    %710 = vmatpush2.msra.mxu0 0.0
    %711 = vmatprep.subr.mxu0 0.0
    %712 = vmatpush2.msra.mxu0 0.0
    %713 = vmatprep.subr.mxu0 0.0
    %714 = vmatpush2.msra.mxu0 0.0
    %715 = vmatprep.mubr.f32.mxu0 0.0
    %716 = vmatmul.mubr.f32.gmra.mxu0 %v646
    %v717 = vpop.f32.mrf.mxu0
    %v718 = vadd.f32 0.0, %v717
    %v719 = vpop.f32.mrf.mxu0
    %720 = vmatprep.mubr.f32.mxu0 0.0
    %721 = vmatmul.mubr.f32.gmra.mxu0 %v649
    %v722 = vpop.f32.mrf.mxu0
    %v723 = vadd.f32 0.0, %v722
    %v724 = vpop.f32.mrf.mxu0
    %725 = vdwg.mxu0
    %v726 = vmul.f32 %v718, 0.5
    %v727 = vmul.f32 %v723, 0.5
    %v728 = vld [vmem:[#allocation8] sm:$0xff]
    %v729 = vld [vmem:[#allocation8 + $0x8] sm:$0xff]
    %v730 = vld [vmem:[#allocation8 + $0x10] sm:$0xff]
    %v731 = vld [vmem:[#allocation8 + $0x18] sm:$0xff]
    %v732 = vld [vmem:[#allocation8 + $0x20] sm:$0xff]
    %v733 = vld [vmem:[#allocation8 + $0x28] sm:$0xff]
    %v734 = vld [vmem:[#allocation8 + $0x30] sm:$0xff]
    %v735 = vld [vmem:[#allocation8 + $0x38] sm:$0xff]
    %v736 = vld [vmem:[#allocation8 + $0x40] sm:$0xff]
    %v737 = vld [vmem:[#allocation8 + $0x48] sm:$0xff]
    %v738 = vld [vmem:[#allocation8 + $0x50] sm:$0xff]
    %v739 = vld [vmem:[#allocation8 + $0x58] sm:$0xff]
    %v740 = vld [vmem:[#allocation8 + $0x60] sm:$0xff]
    %v741 = vld [vmem:[#allocation8 + $0x68] sm:$0xff]
    %v742 = vld [vmem:[#allocation8 + $0x70] sm:$0xff]
    %v743 = vld [vmem:[#allocation8 + $0x78] sm:$0xff]
    %v744 = vld [vmem:[#allocation8 + $0x80] sm:$0xff]
    %v745 = vld [vmem:[#allocation8 + $0x88] sm:$0xff]
    %v746 = vld [vmem:[#allocation8 + $0x90] sm:$0xff]
    %v747 = vld [vmem:[#allocation8 + $0x98] sm:$0xff]
    %v748 = vld [vmem:[#allocation8 + $0xa0] sm:$0xff]
    %v749 = vld [vmem:[#allocation8 + $0xa8] sm:$0xff]
    %v750 = vld [vmem:[#allocation8 + $0xb0] sm:$0xff]
    %v751 = vld [vmem:[#allocation8 + $0xb8] sm:$0xff]
    %v752 = vld [vmem:[#allocation8 + $0xc0] sm:$0xff]
    %v753 = vld [vmem:[#allocation8 + $0xc8] sm:$0xff]
    %v754 = vld [vmem:[#allocation8 + $0xd0] sm:$0xff]
    %v755 = vld [vmem:[#allocation8 + $0xd8] sm:$0xff]
    %v756 = vld [vmem:[#allocation8 + $0xe0] sm:$0xff]
    %v757 = vld [vmem:[#allocation8 + $0xe8] sm:$0xff]
    %v758 = vld [vmem:[#allocation8 + $0xf0] sm:$0xff]
    %v759 = vld [vmem:[#allocation8 + $0xf8] sm:$0xff]
    %v760 = vld [vmem:[#allocation8 + $0x100] sm:$0xff]
    %v761 = vld [vmem:[#allocation8 + $0x108] sm:$0xff]
    %v762 = vld [vmem:[#allocation8 + $0x110] sm:$0xff]
    %v763 = vld [vmem:[#allocation8 + $0x118] sm:$0xff]
    %v764 = vld [vmem:[#allocation8 + $0x120] sm:$0xff]
    %v765 = vld [vmem:[#allocation8 + $0x128] sm:$0xff]
    %v766 = vld [vmem:[#allocation8 + $0x130] sm:$0xff]
    %v767 = vld [vmem:[#allocation8 + $0x138] sm:$0xff]
    %v768 = vld [vmem:[#allocation8 + $0x140] sm:$0xff]
    %v769 = vld [vmem:[#allocation8 + $0x148] sm:$0xff]
    %v770 = vld [vmem:[#allocation8 + $0x150] sm:$0xff]
    %v771 = vld [vmem:[#allocation8 + $0x158] sm:$0xff]
    %v772 = vld [vmem:[#allocation8 + $0x160] sm:$0xff]
    %v773 = vld [vmem:[#allocation8 + $0x168] sm:$0xff]
    %v774 = vld [vmem:[#allocation8 + $0x170] sm:$0xff]
    %v775 = vld [vmem:[#allocation8 + $0x178] sm:$0xff]
    %v776 = vld [vmem:[#allocation8 + $0x180] sm:$0xff]
    %v777 = vld [vmem:[#allocation8 + $0x188] sm:$0xff]
    %v778 = vld [vmem:[#allocation8 + $0x190] sm:$0xff]
    %v779 = vld [vmem:[#allocation8 + $0x198] sm:$0xff]
    %v780 = vld [vmem:[#allocation8 + $0x1a0] sm:$0xff]
    %v781 = vld [vmem:[#allocation8 + $0x1a8] sm:$0xff]
    %v782 = vld [vmem:[#allocation8 + $0x1b0] sm:$0xff]
    %v783 = vld [vmem:[#allocation8 + $0x1b8] sm:$0xff]
    %v784 = vld [vmem:[#allocation8 + $0x1c0] sm:$0xff]
    %v785 = vld [vmem:[#allocation8 + $0x1c8] sm:$0xff]
    %v786 = vld [vmem:[#allocation8 + $0x1d0] sm:$0xff]
    %v787 = vld [vmem:[#allocation8 + $0x1d8] sm:$0xff]
    %v788 = vld [vmem:[#allocation8 + $0x1e0] sm:$0xff]
    %v789 = vld [vmem:[#allocation8 + $0x1e8] sm:$0xff]
    %v790 = vld [vmem:[#allocation8 + $0x1f0] sm:$0xff]
    %v791 = vld [vmem:[#allocation8 + $0x1f8] sm:$0xff]
    %792 = vmatprep.subr.mxu0 %v789
    %793 = vmatpush1.msra.mxu0 %v788
    %794 = vmatprep.subr.mxu0 %v785
    %795 = vmatpush1.msra.mxu0 %v784
    %796 = vmatprep.subr.mxu0 %v781
    %797 = vmatpush1.msra.mxu0 %v780
    %798 = vmatprep.subr.mxu0 %v777
    %799 = vmatpush1.msra.mxu0 %v776
    %800 = vmatprep.subr.mxu0 %v773
    %801 = vmatpush1.msra.mxu0 %v772
    %802 = vmatprep.subr.mxu0 %v769
    %803 = vmatpush1.msra.mxu0 %v768
    %804 = vmatprep.subr.mxu0 %v765
    %805 = vmatpush1.msra.mxu0 %v764
    %806 = vmatprep.subr.mxu0 %v761
    %807 = vmatpush1.msra.mxu0 %v760
    %808 = vmatprep.subr.mxu0 %v757
    %809 = vmatpush1.msra.mxu0 %v756
    %810 = vmatprep.subr.mxu0 %v753
    %811 = vmatpush1.msra.mxu0 %v752
    %812 = vmatprep.subr.mxu0 %v749
    %813 = vmatpush1.msra.mxu0 %v748
    %814 = vmatprep.subr.mxu0 %v745
    %815 = vmatpush1.msra.mxu0 %v744
    %816 = vmatprep.subr.mxu0 %v741
    %817 = vmatpush1.msra.mxu0 %v740
    %818 = vmatprep.subr.mxu0 %v737
    %819 = vmatpush1.msra.mxu0 %v736
    %820 = vmatprep.subr.mxu0 %v733
    %821 = vmatpush1.msra.mxu0 %v732
    %822 = vmatprep.subr.mxu0 %v729
    %823 = vmatpush1.msra.mxu0 %v728
    %824 = vmatprep.subr.mxu0 0.0
    %825 = vmatpush2.msra.mxu0 0.0
    %826 = vmatprep.subr.mxu0 0.0
    %827 = vmatpush2.msra.mxu0 0.0
    %828 = vmatprep.subr.mxu0 0.0
    %829 = vmatpush2.msra.mxu0 0.0
    %830 = vmatprep.subr.mxu0 0.0
    %831 = vmatpush2.msra.mxu0 0.0
    %832 = vmatprep.subr.mxu0 0.0
    %833 = vmatpush2.msra.mxu0 0.0
    %834 = vmatprep.subr.mxu0 0.0
    %835 = vmatpush2.msra.mxu0 0.0
    %836 = vmatprep.subr.mxu0 0.0
    %837 = vmatpush2.msra.mxu0 0.0
    %838 = vmatprep.subr.mxu0 0.0
    %839 = vmatpush2.msra.mxu0 0.0
    %840 = vmatprep.subr.mxu0 0.0
    %841 = vmatpush2.msra.mxu0 0.0
    %842 = vmatprep.subr.mxu0 0.0
    %843 = vmatpush2.msra.mxu0 0.0
    %844 = vmatprep.subr.mxu0 0.0
    %845 = vmatpush2.msra.mxu0 0.0
    %846 = vmatprep.subr.mxu0 0.0
    %847 = vmatpush2.msra.mxu0 0.0
    %848 = vmatprep.subr.mxu0 0.0
    %849 = vmatpush2.msra.mxu0 0.0
    %850 = vmatprep.subr.mxu0 0.0
    %851 = vmatpush2.msra.mxu0 0.0
    %852 = vmatprep.subr.mxu0 0.0
    %853 = vmatpush2.msra.mxu0 0.0
    %854 = vmatprep.subr.mxu0 0.0
    %855 = vmatpush2.msra.mxu0 0.0
    %856 = vmatprep.mubr.f32.mxu0 0.0
    %857 = vmatmul.mubr.f32.gmra.mxu0 %v726
    %v858 = vpop.f32.mrf.mxu0
    %v859 = vadd.f32 0.0, %v858
    %v860 = vpop.f32.mrf.mxu0
    %v861 = vadd.f32 0.0, %v860
    %862 = vmatprep.mubr.f32.mxu0 0.0
    %863 = vmatmul.mubr.f32.gmra.mxu0 %v727
    %v864 = vpop.f32.mrf.mxu0
    %v865 = vadd.f32 0.0, %v864
    %v866 = vpop.f32.mrf.mxu0
    %v867 = vadd.f32 0.0, %v866
    %868 = vdwg.mxu0
    %869 = vmatprep.subr.mxu0 %v791
    %870 = vmatpush1.msra.mxu0 %v790
    %871 = vmatprep.subr.mxu0 %v787
    %872 = vmatpush1.msra.mxu0 %v786
    %873 = vmatprep.subr.mxu0 %v783
    %874 = vmatpush1.msra.mxu0 %v782
    %875 = vmatprep.subr.mxu0 %v779
    %876 = vmatpush1.msra.mxu0 %v778
    %877 = vmatprep.subr.mxu0 %v775
    %878 = vmatpush1.msra.mxu0 %v774
    %879 = vmatprep.subr.mxu0 %v771
    %880 = vmatpush1.msra.mxu0 %v770
    %881 = vmatprep.subr.mxu0 %v767
    %882 = vmatpush1.msra.mxu0 %v766
    %883 = vmatprep.subr.mxu0 %v763
    %884 = vmatpush1.msra.mxu0 %v762
    %885 = vmatprep.subr.mxu0 %v759
    %886 = vmatpush1.msra.mxu0 %v758
    %887 = vmatprep.subr.mxu0 %v755
    %888 = vmatpush1.msra.mxu0 %v754
    %889 = vmatprep.subr.mxu0 %v751
    %890 = vmatpush1.msra.mxu0 %v750
    %891 = vmatprep.subr.mxu0 %v747
    %892 = vmatpush1.msra.mxu0 %v746
    %893 = vmatprep.subr.mxu0 %v743
    %894 = vmatpush1.msra.mxu0 %v742
    %895 = vmatprep.subr.mxu0 %v739
    %896 = vmatpush1.msra.mxu0 %v738
    %897 = vmatprep.subr.mxu0 %v735
    %898 = vmatpush1.msra.mxu0 %v734
    %899 = vmatprep.subr.mxu0 %v731
    %900 = vmatpush1.msra.mxu0 %v730
    %901 = vmatprep.subr.mxu0 0.0
    %902 = vmatpush2.msra.mxu0 0.0
    %903 = vmatprep.subr.mxu0 0.0
    %904 = vmatpush2.msra.mxu0 0.0
    %905 = vmatprep.subr.mxu0 0.0
    %906 = vmatpush2.msra.mxu0 0.0
    %907 = vmatprep.subr.mxu0 0.0
    %908 = vmatpush2.msra.mxu0 0.0
    %909 = vmatprep.subr.mxu0 0.0
    %910 = vmatpush2.msra.mxu0 0.0
    %911 = vmatprep.subr.mxu0 0.0
    %912 = vmatpush2.msra.mxu0 0.0
    %913 = vmatprep.subr.mxu0 0.0
    %914 = vmatpush2.msra.mxu0 0.0
    %915 = vmatprep.subr.mxu0 0.0
    %916 = vmatpush2.msra.mxu0 0.0
    %917 = vmatprep.subr.mxu0 0.0
    %918 = vmatpush2.msra.mxu0 0.0
    %919 = vmatprep.subr.mxu0 0.0
    %920 = vmatpush2.msra.mxu0 0.0
    %921 = vmatprep.subr.mxu0 0.0
    %922 = vmatpush2.msra.mxu0 0.0
    %923 = vmatprep.subr.mxu0 0.0
    %924 = vmatpush2.msra.mxu0 0.0
    %925 = vmatprep.subr.mxu0 0.0
    %926 = vmatpush2.msra.mxu0 0.0
    %927 = vmatprep.subr.mxu0 0.0
    %928 = vmatpush2.msra.mxu0 0.0
    %929 = vmatprep.subr.mxu0 0.0
    %930 = vmatpush2.msra.mxu0 0.0
    %931 = vmatprep.subr.mxu0 0.0
    %932 = vmatpush2.msra.mxu0 0.0
    %933 = vmatprep.mubr.f32.mxu0 0.0
    %934 = vmatmul.mubr.f32.gmra.mxu0 %v726
    %v935 = vpop.f32.mrf.mxu0
    %v936 = vadd.f32 0.0, %v935
    %v937 = vpop.f32.mrf.mxu0
    %v938 = vadd.f32 0.0, %v937
    %939 = vmatprep.mubr.f32.mxu0 0.0
    %940 = vmatmul.mubr.f32.gmra.mxu0 %v727
    %v941 = vpop.f32.mrf.mxu0
    %v942 = vadd.f32 0.0, %v941
    %v943 = vpop.f32.mrf.mxu0
    %v944 = vadd.f32 0.0, %v943
    %945 = vdwg.mxu0
    %v946 = vtanh.pop %v859
    %v947 = vtanh.pop %v861
    %v948 = vtanh.pop %v936
    %v949 = vtanh.pop %v938
    %v950 = vtanh.pop %v865
    %v951 = vtanh.pop %v867
    %v952 = vtanh.pop %v942
    %v953 = vtanh.pop %v944
    %v954 = vmul.f32 %v947, 0.25
    %v955 = vmul.f32 %v951, 0.25
    %956 = vmatprep.subr.mxu0 0.0
    %957 = vmatpush1.xpose.msra.mxu0 0.0
    %958 = vmatprep.subr.mxu0 0.0
    %959 = vmatpush1.xpose.msra.mxu0 0.0
    %960 = vmatprep.subr.mxu0 0.0
    %961 = vmatpush1.xpose.msra.mxu0 0.0
    %962 = vmatprep.subr.mxu0 0.0
    %963 = vmatpush1.xpose.msra.mxu0 0.0
    %964 = vmatprep.subr.mxu0 0.0
    %965 = vmatpush1.xpose.msra.mxu0 0.0
    %966 = vmatprep.subr.mxu0 0.0
    %967 = vmatpush1.xpose.msra.mxu0 0.0
    %968 = vmatprep.subr.mxu0 0.0
    %969 = vmatpush1.xpose.msra.mxu0 0.0
    %970 = vmatprep.subr.mxu0 0.0
    %971 = vmatpush1.xpose.msra.mxu0 0.0
    %972 = vmatprep.subr.mxu0 0.0
    %973 = vmatpush1.xpose.msra.mxu0 0.0
    %974 = vmatprep.subr.mxu0 0.0
    %975 = vmatpush1.xpose.msra.mxu0 0.0
    %976 = vmatprep.subr.mxu0 0.0
    %977 = vmatpush1.xpose.msra.mxu0 0.0
    %978 = vmatprep.subr.mxu0 0.0
    %979 = vmatpush1.xpose.msra.mxu0 0.0
    %980 = vmatprep.subr.mxu0 0.0
    %981 = vmatpush1.xpose.msra.mxu0 0.0
    %982 = vmatprep.subr.mxu0 0.0
    %983 = vmatpush1.xpose.msra.mxu0 0.0
    %984 = vmatprep.subr.mxu0 0.0
    %985 = vmatpush1.xpose.msra.mxu0 %v950
    %986 = vmatprep.subr.mxu0 0.0
    %987 = vmatpush1.xpose.msra.mxu0 %v946
    %988 = vmatprep.subr.mxu0 0.0
    %989 = vmatpush2.xpose.msra.mxu0 0.0
    %990 = vmatprep.subr.mxu0 0.0
    %991 = vmatpush2.xpose.msra.mxu0 0.0
    %992 = vmatprep.subr.mxu0 0.0
    %993 = vmatpush2.xpose.msra.mxu0 0.0
    %994 = vmatprep.subr.mxu0 0.0
    %995 = vmatpush2.xpose.msra.mxu0 0.0
    %996 = vmatprep.subr.mxu0 0.0
    %997 = vmatpush2.xpose.msra.mxu0 0.0
    %998 = vmatprep.subr.mxu0 0.0
    %999 = vmatpush2.xpose.msra.mxu0 0.0
    %1000 = vmatprep.subr.mxu0 0.0
    %1001 = vmatpush2.xpose.msra.mxu0 0.0
    %1002 = vmatprep.subr.mxu0 0.0
    %1003 = vmatpush2.xpose.msra.mxu0 0.0
    %1004 = vmatprep.subr.mxu0 0.0
    %1005 = vmatpush2.xpose.msra.mxu0 0.0
    %1006 = vmatprep.subr.mxu0 0.0
    %1007 = vmatpush2.xpose.msra.mxu0 0.0
    %1008 = vmatprep.subr.mxu0 0.0
    %1009 = vmatpush2.xpose.msra.mxu0 0.0
    %1010 = vmatprep.subr.mxu0 0.0
    %1011 = vmatpush2.xpose.msra.mxu0 0.0
    %1012 = vmatprep.subr.mxu0 0.0
    %1013 = vmatpush2.xpose.msra.mxu0 0.0
    %1014 = vmatprep.subr.mxu0 0.0
    %1015 = vmatpush2.xpose.msra.mxu0 0.0
    %1016 = vmatprep.subr.mxu0 0.0
    %1017 = vmatpush2.xpose.msra.mxu0 0.0
    %1018 = vmatprep.subr.mxu0 0.0
    %1019 = vmatpush2.xpose.msra.mxu0 0.0
    %1020 = vmatprep.mubr.f32.mxu0 0.0
    %1021 = vmatmul.mubr.f32.gmra.mxu0 %v954
    %v1022 = vpop.f32.mrf.mxu0
    %v1023 = vadd.f32 0.0, %v1022
    %v1024 = vpop.f32.mrf.mxu0
    %1025 = vmatprep.mubr.f32.mxu0 0.0
    %1026 = vmatmul.mubr.f32.gmra.mxu0 %v955
    %v1027 = vpop.f32.mrf.mxu0
    %v1028 = vadd.f32 0.0, %v1027
    %v1029 = vpop.f32.mrf.mxu0
    %1030 = vdwg.mxu0
    %v1031 = vmul.f32 %v1023, 1.442695
    %v1032 = vpow.pop %v1031
    %v1033 = vmul.f32 %v1028, 1.442695
    %v1034 = vpow.pop %v1033
    %v1035 = vmul.f32 %v1032, %v91
    %v1036 = vmul.f32 %v1034, %v92
    %v1037 = vsel %vm363, %v1035, 0.0
    %1038 = vadd.xlane.f32.xlu0 %v1037
    %v1039 = vpop.xlane.xlu0 %1038
    %v1040 = vsel %vm363, %v1036, 0.0
    %1041 = vadd.xlane.f32.xlu0 %v1040
    %v1042 = vpop.xlane.xlu0 %1041
    %v1043 = vrcp.pop %v1039
    %v1044 = vrcp.pop %v1042
    %v1045 = vmul.f32 %v1039, %v1043
    %v1046 = vmul.f32 %v1042, %v1044
    %v1047 = vsub.f32 2.0, %v1045
    %v1048 = vsub.f32 2.0, %v1046
    %v1049 = vmul.f32 %v1043, %v1047
    %v1050 = vmul.f32 %v1044, %v1048
    %v1051 = vtanh.pop %v946
    %v1052 = vtanh.pop %v950
    %v1053 = vmul.f32 %v1051, %v1049
    %v1054 = vmul.f32 %v1052, %v1050
    %v1055 = vmul.f32 %v949, 0.25
    %v1056 = vmul.f32 %v953, 0.25
    %1057 = vmatprep.subr.mxu0 0.0
    %1058 = vmatpush1.xpose.msra.mxu0 0.0
    %1059 = vmatprep.subr.mxu0 0.0
    %1060 = vmatpush1.xpose.msra.mxu0 0.0
    %1061 = vmatprep.subr.mxu0 0.0
    %1062 = vmatpush1.xpose.msra.mxu0 0.0
    %1063 = vmatprep.subr.mxu0 0.0
    %1064 = vmatpush1.xpose.msra.mxu0 0.0
    %1065 = vmatprep.subr.mxu0 0.0
    %1066 = vmatpush1.xpose.msra.mxu0 0.0
    %1067 = vmatprep.subr.mxu0 0.0
    %1068 = vmatpush1.xpose.msra.mxu0 0.0
    %1069 = vmatprep.subr.mxu0 0.0
    %1070 = vmatpush1.xpose.msra.mxu0 0.0
    %1071 = vmatprep.subr.mxu0 0.0
    %1072 = vmatpush1.xpose.msra.mxu0 0.0
    %1073 = vmatprep.subr.mxu0 0.0
    %1074 = vmatpush1.xpose.msra.mxu0 0.0
    %1075 = vmatprep.subr.mxu0 0.0
    %1076 = vmatpush1.xpose.msra.mxu0 0.0
    %1077 = vmatprep.subr.mxu0 0.0
    %1078 = vmatpush1.xpose.msra.mxu0 0.0
    %1079 = vmatprep.subr.mxu0 0.0
    %1080 = vmatpush1.xpose.msra.mxu0 0.0
    %1081 = vmatprep.subr.mxu0 0.0
    %1082 = vmatpush1.xpose.msra.mxu0 0.0
    %1083 = vmatprep.subr.mxu0 0.0
    %1084 = vmatpush1.xpose.msra.mxu0 0.0
    %1085 = vmatprep.subr.mxu0 0.0
    %1086 = vmatpush1.xpose.msra.mxu0 %v952
    %1087 = vmatprep.subr.mxu0 0.0
    %1088 = vmatpush1.xpose.msra.mxu0 %v948
    %1089 = vmatprep.subr.mxu0 0.0
    %1090 = vmatpush2.xpose.msra.mxu0 0.0
    %1091 = vmatprep.subr.mxu0 0.0
    %1092 = vmatpush2.xpose.msra.mxu0 0.0
    %1093 = vmatprep.subr.mxu0 0.0
    %1094 = vmatpush2.xpose.msra.mxu0 0.0
    %1095 = vmatprep.subr.mxu0 0.0
    %1096 = vmatpush2.xpose.msra.mxu0 0.0
    %1097 = vmatprep.subr.mxu0 0.0
    %1098 = vmatpush2.xpose.msra.mxu0 0.0
    %1099 = vmatprep.subr.mxu0 0.0
    %1100 = vmatpush2.xpose.msra.mxu0 0.0
    %1101 = vmatprep.subr.mxu0 0.0
    %1102 = vmatpush2.xpose.msra.mxu0 0.0
    %1103 = vmatprep.subr.mxu0 0.0
    %1104 = vmatpush2.xpose.msra.mxu0 0.0
    %1105 = vmatprep.subr.mxu0 0.0
    %1106 = vmatpush2.xpose.msra.mxu0 0.0
    %1107 = vmatprep.subr.mxu0 0.0
    %1108 = vmatpush2.xpose.msra.mxu0 0.0
    %1109 = vmatprep.subr.mxu0 0.0
    %1110 = vmatpush2.xpose.msra.mxu0 0.0
    %1111 = vmatprep.subr.mxu0 0.0
    %1112 = vmatpush2.xpose.msra.mxu0 0.0
    %1113 = vmatprep.subr.mxu0 0.0
    %1114 = vmatpush2.xpose.msra.mxu0 0.0
    %1115 = vmatprep.subr.mxu0 0.0
    %1116 = vmatpush2.xpose.msra.mxu0 0.0
    %1117 = vmatprep.subr.mxu0 0.0
    %1118 = vmatpush2.xpose.msra.mxu0 0.0
    %1119 = vmatprep.subr.mxu0 0.0
    %1120 = vmatpush2.xpose.msra.mxu0 0.0
    %1121 = vmatprep.mubr.f32.mxu0 0.0
    %1122 = vmatmul.mubr.f32.gmra.mxu0 %v1055
    %v1123 = vpop.f32.mrf.mxu0
    %v1124 = vadd.f32 0.0, %v1123
    %v1125 = vpop.f32.mrf.mxu0
    %1126 = vmatprep.mubr.f32.mxu0 0.0
    %1127 = vmatmul.mubr.f32.gmra.mxu0 %v1056
    %v1128 = vpop.f32.mrf.mxu0
    %v1129 = vadd.f32 0.0, %v1128
    %v1130 = vpop.f32.mrf.mxu0
    %1131 = vdwg.mxu0
    %v1132 = vmul.f32 %v1124, 1.442695
    %v1133 = vpow.pop %v1132
    %v1134 = vmul.f32 %v1129, 1.442695
    %v1135 = vpow.pop %v1134
    %v1136 = vmul.f32 %v1133, %v91
    %v1137 = vmul.f32 %v1135, %v92
    %v1138 = vsel %vm363, %v1136, 0.0
    %1139 = vadd.xlane.f32.xlu0 %v1138
    %v1140 = vpop.xlane.xlu0 %1139
    %v1141 = vsel %vm363, %v1137, 0.0
    %1142 = vadd.xlane.f32.xlu0 %v1141
    %v1143 = vpop.xlane.xlu0 %1142
    %v1144 = vrcp.pop %v1140
    %v1145 = vrcp.pop %v1143
    %v1146 = vmul.f32 %v1140, %v1144
    %v1147 = vmul.f32 %v1143, %v1145
    %v1148 = vsub.f32 2.0, %v1146
    %v1149 = vsub.f32 2.0, %v1147
    %v1150 = vmul.f32 %v1144, %v1148
    %v1151 = vmul.f32 %v1145, %v1149
    %v1152 = vtanh.pop %v948
    %v1153 = vtanh.pop %v952
    %v1154 = vmul.f32 %v1152, %v1150
    %v1155 = vmul.f32 %v1153, %v1151
    %v1157 = vsel %vm363, %v1136, 0
    %v1160 = vsel %vm363, %v1137, 0
    %1162 = vmatprep.subr.mxu0 0.0
    %1163 = vmatpush1.msra.mxu0 0.0
    %1164 = vmatprep.subr.mxu0 0.0
    %1165 = vmatpush1.msra.mxu0 0.0
    %1166 = vmatprep.subr.mxu0 0.0
    %1167 = vmatpush1.msra.mxu0 0.0
    %1168 = vmatprep.subr.mxu0 0.0
    %1169 = vmatpush1.msra.mxu0 0.0
    %1170 = vmatprep.subr.mxu0 0.0
    %1171 = vmatpush1.msra.mxu0 0.0
    %1172 = vmatprep.subr.mxu0 0.0
    %1173 = vmatpush1.msra.mxu0 0.0
    %1174 = vmatprep.subr.mxu0 0.0
    %1175 = vmatpush1.msra.mxu0 0.0
    %1176 = vmatprep.subr.mxu0 0.0
    %1177 = vmatpush1.msra.mxu0 0.0
    %1178 = vmatprep.subr.mxu0 0.0
    %1179 = vmatpush1.msra.mxu0 0.0
    %1180 = vmatprep.subr.mxu0 0.0
    %1181 = vmatpush1.msra.mxu0 0.0
    %1182 = vmatprep.subr.mxu0 0.0
    %1183 = vmatpush1.msra.mxu0 0.0
    %1184 = vmatprep.subr.mxu0 0.0
    %1185 = vmatpush1.msra.mxu0 0.0
    %1186 = vmatprep.subr.mxu0 0.0
    %1187 = vmatpush1.msra.mxu0 0.0
    %1188 = vmatprep.subr.mxu0 0.0
    %1189 = vmatpush1.msra.mxu0 0.0
    %1190 = vmatprep.subr.mxu0 0.0
    %1191 = vmatpush1.msra.mxu0 %v1155
    %1192 = vmatprep.subr.mxu0 0.0
    %1193 = vmatpush1.msra.mxu0 %v1154
    %1194 = vmatprep.subr.mxu0 0.0
    %1195 = vmatpush2.msra.mxu0 0.0
    %1196 = vmatprep.subr.mxu0 0.0
    %1197 = vmatpush2.msra.mxu0 0.0
    %1198 = vmatprep.subr.mxu0 0.0
    %1199 = vmatpush2.msra.mxu0 0.0
    %1200 = vmatprep.subr.mxu0 0.0
    %1201 = vmatpush2.msra.mxu0 0.0
    %1202 = vmatprep.subr.mxu0 0.0
    %1203 = vmatpush2.msra.mxu0 0.0
    %1204 = vmatprep.subr.mxu0 0.0
    %1205 = vmatpush2.msra.mxu0 0.0
    %1206 = vmatprep.subr.mxu0 0.0
    %1207 = vmatpush2.msra.mxu0 0.0
    %1208 = vmatprep.subr.mxu0 0.0
    %1209 = vmatpush2.msra.mxu0 0.0
    %1210 = vmatprep.subr.mxu0 0.0
    %1211 = vmatpush2.msra.mxu0 0.0
    %1212 = vmatprep.subr.mxu0 0.0
    %1213 = vmatpush2.msra.mxu0 0.0
    %1214 = vmatprep.subr.mxu0 0.0
    %1215 = vmatpush2.msra.mxu0 0.0
    %1216 = vmatprep.subr.mxu0 0.0
    %1217 = vmatpush2.msra.mxu0 0.0
    %1218 = vmatprep.subr.mxu0 0.0
    %1219 = vmatpush2.msra.mxu0 0.0
    %1220 = vmatprep.subr.mxu0 0.0
    %1221 = vmatpush2.msra.mxu0 0.0
    %1222 = vmatprep.subr.mxu0 0.0
    %1223 = vmatpush2.msra.mxu0 0.0
    %1224 = vmatprep.subr.mxu0 0.0
    %1225 = vmatpush2.msra.mxu0 0.0
    %1226 = vmatprep.mubr.f32.mxu0 0.0
    %1227 = vmatmul.mubr.f32.gmra.mxu0 %v1157
    %v1228 = vpop.f32.mrf.mxu0
    %v1229 = vadd.f32 0.0, %v1228
    %v1230 = vpop.f32.mrf.mxu0
    %1231 = vmatprep.mubr.f32.mxu0 0.0
    %1232 = vmatmul.mubr.f32.gmra.mxu0 %v1160
    %v1233 = vpop.f32.mrf.mxu0
    %v1234 = vadd.f32 0.0, %v1233
    %v1235 = vpop.f32.mrf.mxu0
    %1236 = vdwg.mxu0
    %v1238 = vsel %vm363, %v1035, 0
    %v1241 = vsel %vm363, %v1036, 0
    %1243 = vmatprep.subr.mxu0 0.0
    %1244 = vmatpush1.msra.mxu0 0.0
    %1245 = vmatprep.subr.mxu0 0.0
    %1246 = vmatpush1.msra.mxu0 0.0
    %1247 = vmatprep.subr.mxu0 0.0
    %1248 = vmatpush1.msra.mxu0 0.0
    %1249 = vmatprep.subr.mxu0 0.0
    %1250 = vmatpush1.msra.mxu0 0.0
    %1251 = vmatprep.subr.mxu0 0.0
    %1252 = vmatpush1.msra.mxu0 0.0
    %1253 = vmatprep.subr.mxu0 0.0
    %1254 = vmatpush1.msra.mxu0 0.0
    %1255 = vmatprep.subr.mxu0 0.0
    %1256 = vmatpush1.msra.mxu0 0.0
    %1257 = vmatprep.subr.mxu0 0.0
    %1258 = vmatpush1.msra.mxu0 0.0
    %1259 = vmatprep.subr.mxu0 0.0
    %1260 = vmatpush1.msra.mxu0 0.0
    %1261 = vmatprep.subr.mxu0 0.0
    %1262 = vmatpush1.msra.mxu0 0.0
    %1263 = vmatprep.subr.mxu0 0.0
    %1264 = vmatpush1.msra.mxu0 0.0
    %1265 = vmatprep.subr.mxu0 0.0
    %1266 = vmatpush1.msra.mxu0 0.0
    %1267 = vmatprep.subr.mxu0 0.0
    %1268 = vmatpush1.msra.mxu0 0.0
    %1269 = vmatprep.subr.mxu0 0.0
    %1270 = vmatpush1.msra.mxu0 0.0
    %1271 = vmatprep.subr.mxu0 0.0
    %1272 = vmatpush1.msra.mxu0 %v1054
    %1273 = vmatprep.subr.mxu0 0.0
    %1274 = vmatpush1.msra.mxu0 %v1053
    %1275 = vmatprep.subr.mxu0 0.0
    %1276 = vmatpush2.msra.mxu0 0.0
    %1277 = vmatprep.subr.mxu0 0.0
    %1278 = vmatpush2.msra.mxu0 0.0
    %1279 = vmatprep.subr.mxu0 0.0
    %1280 = vmatpush2.msra.mxu0 0.0
    %1281 = vmatprep.subr.mxu0 0.0
    %1282 = vmatpush2.msra.mxu0 0.0
    %1283 = vmatprep.subr.mxu0 0.0
    %1284 = vmatpush2.msra.mxu0 0.0
    %1285 = vmatprep.subr.mxu0 0.0
    %1286 = vmatpush2.msra.mxu0 0.0
    %1287 = vmatprep.subr.mxu0 0.0
    %1288 = vmatpush2.msra.mxu0 0.0
    %1289 = vmatprep.subr.mxu0 0.0
    %1290 = vmatpush2.msra.mxu0 0.0
    %1291 = vmatprep.subr.mxu0 0.0
    %1292 = vmatpush2.msra.mxu0 0.0
    %1293 = vmatprep.subr.mxu0 0.0
    %1294 = vmatpush2.msra.mxu0 0.0
    %1295 = vmatprep.subr.mxu0 0.0
    %1296 = vmatpush2.msra.mxu0 0.0
    %1297 = vmatprep.subr.mxu0 0.0
    %1298 = vmatpush2.msra.mxu0 0.0
    %1299 = vmatprep.subr.mxu0 0.0
    %1300 = vmatpush2.msra.mxu0 0.0
    %1301 = vmatprep.subr.mxu0 0.0
    %1302 = vmatpush2.msra.mxu0 0.0
    %1303 = vmatprep.subr.mxu0 0.0
    %1304 = vmatpush2.msra.mxu0 0.0
    %1305 = vmatprep.subr.mxu0 0.0
    %1306 = vmatpush2.msra.mxu0 0.0
    %1307 = vmatprep.mubr.f32.mxu0 0.0
    %1308 = vmatmul.mubr.f32.gmra.mxu0 %v1238
    %v1309 = vpop.f32.mrf.mxu0
    %v1310 = vadd.f32 %v1229, %v1309
    %v1311 = vpop.f32.mrf.mxu0
    %1312 = vmatprep.mubr.f32.mxu0 0.0
    %1313 = vmatmul.mubr.f32.gmra.mxu0 %v1241
    %v1314 = vpop.f32.mrf.mxu0
    %v1315 = vadd.f32 %v1234, %v1314
    %v1316 = vpop.f32.mrf.mxu0
    %1317 = vdwg.mxu0
    %1318 = vmatprep.subr.mxu0 0.0
    %1319 = vmatpush1.msra.mxu0 0.0
    %1320 = vmatprep.subr.mxu0 0.0
    %1321 = vmatpush1.msra.mxu0 0.0
    %1322 = vmatprep.subr.mxu0 0.0
    %1323 = vmatpush1.msra.mxu0 0.0
    %1324 = vmatprep.subr.mxu0 0.0
    %1325 = vmatpush1.msra.mxu0 0.0
    %1326 = vmatprep.subr.mxu0 0.0
    %1327 = vmatpush1.msra.mxu0 0.0
    %1328 = vmatprep.subr.mxu0 0.0
    %1329 = vmatpush1.msra.mxu0 0.0
    %1330 = vmatprep.subr.mxu0 0.0
    %1331 = vmatpush1.msra.mxu0 0.0
    %1332 = vmatprep.subr.mxu0 0.0
    %1333 = vmatpush1.msra.mxu0 0.0
    %1334 = vmatprep.subr.mxu0 0.0
    %1335 = vmatpush1.msra.mxu0 0.0
    %1336 = vmatprep.subr.mxu0 0.0
    %1337 = vmatpush1.msra.mxu0 0.0
    %1338 = vmatprep.subr.mxu0 0.0
    %1339 = vmatpush1.msra.mxu0 0.0
    %1340 = vmatprep.subr.mxu0 0.0
    %1341 = vmatpush1.msra.mxu0 0.0
    %1342 = vmatprep.subr.mxu0 0.0
    %1343 = vmatpush1.msra.mxu0 0.0
    %1344 = vmatprep.subr.mxu0 0.0
    %1345 = vmatpush1.msra.mxu0 0.0
    %1346 = vmatprep.subr.mxu0 0.0
    %1347 = vmatpush1.msra.mxu0 %v1315
    %1348 = vmatprep.subr.mxu0 0.0
    %1349 = vmatpush1.msra.mxu0 %v1310
    %1350 = vmatprep.subr.mxu0 0.0
    %1351 = vmatpush2.msra.mxu0 0.0
    %1352 = vmatprep.subr.mxu0 0.0
    %1353 = vmatpush2.msra.mxu0 0.0
    %1354 = vmatprep.subr.mxu0 0.0
    %1355 = vmatpush2.msra.mxu0 0.0
    %1356 = vmatprep.subr.mxu0 0.0
    %1357 = vmatpush2.msra.mxu0 0.0
    %1358 = vmatprep.subr.mxu0 0.0
    %1359 = vmatpush2.msra.mxu0 0.0
    %1360 = vmatprep.subr.mxu0 0.0
    %1361 = vmatpush2.msra.mxu0 0.0
    %1362 = vmatprep.subr.mxu0 0.0
    %1363 = vmatpush2.msra.mxu0 0.0
    %1364 = vmatprep.subr.mxu0 0.0
    %1365 = vmatpush2.msra.mxu0 0.0
    %1366 = vmatprep.subr.mxu0 0.0
    %1367 = vmatpush2.msra.mxu0 0.0
    %1368 = vmatprep.subr.mxu0 0.0
    %1369 = vmatpush2.msra.mxu0 0.0
    %1370 = vmatprep.subr.mxu0 0.0
    %1371 = vmatpush2.msra.mxu0 0.0
    %1372 = vmatprep.subr.mxu0 0.0
    %1373 = vmatpush2.msra.mxu0 0.0
    %1374 = vmatprep.subr.mxu0 0.0
    %1375 = vmatpush2.msra.mxu0 0.0
    %1376 = vmatprep.subr.mxu0 0.0
    %1377 = vmatpush2.msra.mxu0 0.0
    %1378 = vmatprep.subr.mxu0 0.0
    %1379 = vmatpush2.msra.mxu0 0.0
    %1380 = vmatprep.subr.mxu0 0.0
    %1381 = vmatpush2.msra.mxu0 0.0
    %1382 = vmatprep.mubr.f32.mxu0 0.0
    %1383 = vmatmul.mubr.f32.gmra.mxu0 %v646
    %v1384 = vpop.f32.mrf.mxu0
    %v1385 = vadd.f32 0.0, %v1384
    %v1386 = vpop.f32.mrf.mxu0
    %1387 = vmatprep.mubr.f32.mxu0 0.0
    %1388 = vmatmul.mubr.f32.gmra.mxu0 %v649
    %v1389 = vpop.f32.mrf.mxu0
    %v1390 = vadd.f32 0.0, %v1389
    %v1391 = vpop.f32.mrf.mxu0
    %1392 = vdwg.mxu0
    %v1393 = vmul.f32 %v1385, 0.5
    %v1394 = vmul.f32 %v1390, 0.5
    %v1395 = vld [vmem:[#allocation10] sm:$0xff]
    %v1396 = vld [vmem:[#allocation10 + $0x8] sm:$0xff]
    %v1397 = vld [vmem:[#allocation10 + $0x10] sm:$0xff]
    %v1398 = vld [vmem:[#allocation10 + $0x18] sm:$0xff]
    %v1399 = vld [vmem:[#allocation10 + $0x20] sm:$0xff]
    %v1400 = vld [vmem:[#allocation10 + $0x28] sm:$0xff]
    %v1401 = vld [vmem:[#allocation10 + $0x30] sm:$0xff]
    %v1402 = vld [vmem:[#allocation10 + $0x38] sm:$0xff]
    %v1403 = vld [vmem:[#allocation10 + $0x40] sm:$0xff]
    %v1404 = vld [vmem:[#allocation10 + $0x48] sm:$0xff]
    %v1405 = vld [vmem:[#allocation10 + $0x50] sm:$0xff]
    %v1406 = vld [vmem:[#allocation10 + $0x58] sm:$0xff]
    %v1407 = vld [vmem:[#allocation10 + $0x60] sm:$0xff]
    %v1408 = vld [vmem:[#allocation10 + $0x68] sm:$0xff]
    %v1409 = vld [vmem:[#allocation10 + $0x70] sm:$0xff]
    %v1410 = vld [vmem:[#allocation10 + $0x78] sm:$0xff]
    %v1411 = vld [vmem:[#allocation10 + $0x80] sm:$0xff]
    %v1412 = vld [vmem:[#allocation10 + $0x88] sm:$0xff]
    %v1413 = vld [vmem:[#allocation10 + $0x90] sm:$0xff]
    %v1414 = vld [vmem:[#allocation10 + $0x98] sm:$0xff]
    %v1415 = vld [vmem:[#allocation10 + $0xa0] sm:$0xff]
    %v1416 = vld [vmem:[#allocation10 + $0xa8] sm:$0xff]
    %v1417 = vld [vmem:[#allocation10 + $0xb0] sm:$0xff]
    %v1418 = vld [vmem:[#allocation10 + $0xb8] sm:$0xff]
    %v1419 = vld [vmem:[#allocation10 + $0xc0] sm:$0xff]
    %v1420 = vld [vmem:[#allocation10 + $0xc8] sm:$0xff]
    %v1421 = vld [vmem:[#allocation10 + $0xd0] sm:$0xff]
    %v1422 = vld [vmem:[#allocation10 + $0xd8] sm:$0xff]
    %v1423 = vld [vmem:[#allocation10 + $0xe0] sm:$0xff]
    %v1424 = vld [vmem:[#allocation10 + $0xe8] sm:$0xff]
    %v1425 = vld [vmem:[#allocation10 + $0xf0] sm:$0xff]
    %v1426 = vld [vmem:[#allocation10 + $0xf8] sm:$0xff]
    %v1427 = vld [vmem:[#allocation10 + $0x100] sm:$0xff]
    %v1428 = vld [vmem:[#allocation10 + $0x108] sm:$0xff]
    %v1429 = vld [vmem:[#allocation10 + $0x110] sm:$0xff]
    %v1430 = vld [vmem:[#allocation10 + $0x118] sm:$0xff]
    %v1431 = vld [vmem:[#allocation10 + $0x120] sm:$0xff]
    %v1432 = vld [vmem:[#allocation10 + $0x128] sm:$0xff]
    %v1433 = vld [vmem:[#allocation10 + $0x130] sm:$0xff]
    %v1434 = vld [vmem:[#allocation10 + $0x138] sm:$0xff]
    %v1435 = vld [vmem:[#allocation10 + $0x140] sm:$0xff]
    %v1436 = vld [vmem:[#allocation10 + $0x148] sm:$0xff]
    %v1437 = vld [vmem:[#allocation10 + $0x150] sm:$0xff]
    %v1438 = vld [vmem:[#allocation10 + $0x158] sm:$0xff]
    %v1439 = vld [vmem:[#allocation10 + $0x160] sm:$0xff]
    %v1440 = vld [vmem:[#allocation10 + $0x168] sm:$0xff]
    %v1441 = vld [vmem:[#allocation10 + $0x170] sm:$0xff]
    %v1442 = vld [vmem:[#allocation10 + $0x178] sm:$0xff]
    %v1443 = vld [vmem:[#allocation10 + $0x180] sm:$0xff]
    %v1444 = vld [vmem:[#allocation10 + $0x188] sm:$0xff]
    %v1445 = vld [vmem:[#allocation10 + $0x190] sm:$0xff]
    %v1446 = vld [vmem:[#allocation10 + $0x198] sm:$0xff]
    %v1447 = vld [vmem:[#allocation10 + $0x1a0] sm:$0xff]
    %v1448 = vld [vmem:[#allocation10 + $0x1a8] sm:$0xff]
    %v1449 = vld [vmem:[#allocation10 + $0x1b0] sm:$0xff]
    %v1450 = vld [vmem:[#allocation10 + $0x1b8] sm:$0xff]
    %v1451 = vld [vmem:[#allocation10 + $0x1c0] sm:$0xff]
    %v1452 = vld [vmem:[#allocation10 + $0x1c8] sm:$0xff]
    %v1453 = vld [vmem:[#allocation10 + $0x1d0] sm:$0xff]
    %v1454 = vld [vmem:[#allocation10 + $0x1d8] sm:$0xff]
    %v1455 = vld [vmem:[#allocation10 + $0x1e0] sm:$0xff]
    %v1456 = vld [vmem:[#allocation10 + $0x1e8] sm:$0xff]
    %v1457 = vld [vmem:[#allocation10 + $0x1f0] sm:$0xff]
    %v1458 = vld [vmem:[#allocation10 + $0x1f8] sm:$0xff]
    %1459 = vmatprep.subr.mxu0 %v1456
    %1460 = vmatpush1.msra.mxu0 %v1455
    %1461 = vmatprep.subr.mxu0 %v1452
    %1462 = vmatpush1.msra.mxu0 %v1451
    %1463 = vmatprep.subr.mxu0 %v1448
    %1464 = vmatpush1.msra.mxu0 %v1447
    %1465 = vmatprep.subr.mxu0 %v1444
    %1466 = vmatpush1.msra.mxu0 %v1443
    %1467 = vmatprep.subr.mxu0 %v1440
    %1468 = vmatpush1.msra.mxu0 %v1439
    %1469 = vmatprep.subr.mxu0 %v1436
    %1470 = vmatpush1.msra.mxu0 %v1435
    %1471 = vmatprep.subr.mxu0 %v1432
    %1472 = vmatpush1.msra.mxu0 %v1431
    %1473 = vmatprep.subr.mxu0 %v1428
    %1474 = vmatpush1.msra.mxu0 %v1427
    %1475 = vmatprep.subr.mxu0 %v1424
    %1476 = vmatpush1.msra.mxu0 %v1423
    %1477 = vmatprep.subr.mxu0 %v1420
    %1478 = vmatpush1.msra.mxu0 %v1419
    %1479 = vmatprep.subr.mxu0 %v1416
    %1480 = vmatpush1.msra.mxu0 %v1415
    %1481 = vmatprep.subr.mxu0 %v1412
    %1482 = vmatpush1.msra.mxu0 %v1411
    %1483 = vmatprep.subr.mxu0 %v1408
    %1484 = vmatpush1.msra.mxu0 %v1407
    %1485 = vmatprep.subr.mxu0 %v1404
    %1486 = vmatpush1.msra.mxu0 %v1403
    %1487 = vmatprep.subr.mxu0 %v1400
    %1488 = vmatpush1.msra.mxu0 %v1399
    %1489 = vmatprep.subr.mxu0 %v1396
    %1490 = vmatpush1.msra.mxu0 %v1395
    %1491 = vmatprep.subr.mxu0 0.0
    %1492 = vmatpush2.msra.mxu0 0.0
    %1493 = vmatprep.subr.mxu0 0.0
    %1494 = vmatpush2.msra.mxu0 0.0
    %1495 = vmatprep.subr.mxu0 0.0
    %1496 = vmatpush2.msra.mxu0 0.0
    %1497 = vmatprep.subr.mxu0 0.0
    %1498 = vmatpush2.msra.mxu0 0.0
    %1499 = vmatprep.subr.mxu0 0.0
    %1500 = vmatpush2.msra.mxu0 0.0
    %1501 = vmatprep.subr.mxu0 0.0
    %1502 = vmatpush2.msra.mxu0 0.0
    %1503 = vmatprep.subr.mxu0 0.0
    %1504 = vmatpush2.msra.mxu0 0.0
    %1505 = vmatprep.subr.mxu0 0.0
    %1506 = vmatpush2.msra.mxu0 0.0
    %1507 = vmatprep.subr.mxu0 0.0
    %1508 = vmatpush2.msra.mxu0 0.0
    %1509 = vmatprep.subr.mxu0 0.0
    %1510 = vmatpush2.msra.mxu0 0.0
    %1511 = vmatprep.subr.mxu0 0.0
    %1512 = vmatpush2.msra.mxu0 0.0
    %1513 = vmatprep.subr.mxu0 0.0
    %1514 = vmatpush2.msra.mxu0 0.0
    %1515 = vmatprep.subr.mxu0 0.0
    %1516 = vmatpush2.msra.mxu0 0.0
    %1517 = vmatprep.subr.mxu0 0.0
    %1518 = vmatpush2.msra.mxu0 0.0
    %1519 = vmatprep.subr.mxu0 0.0
    %1520 = vmatpush2.msra.mxu0 0.0
    %1521 = vmatprep.subr.mxu0 0.0
    %1522 = vmatpush2.msra.mxu0 0.0
    %1523 = vmatprep.mubr.f32.mxu0 0.0
    %1524 = vmatmul.mubr.f32.gmra.mxu0 %v1393
    %v1525 = vpop.f32.mrf.mxu0
    %v1526 = vadd.f32 0.0, %v1525
    %v1527 = vpop.f32.mrf.mxu0
    %v1528 = vadd.f32 0.0, %v1527
    %1529 = vmatprep.mubr.f32.mxu0 0.0
    %1530 = vmatmul.mubr.f32.gmra.mxu0 %v1394
    %v1531 = vpop.f32.mrf.mxu0
    %v1532 = vadd.f32 0.0, %v1531
    %v1533 = vpop.f32.mrf.mxu0
    %v1534 = vadd.f32 0.0, %v1533
    %1535 = vdwg.mxu0
    %1536 = vmatprep.subr.mxu0 %v1458
    %1537 = vmatpush1.msra.mxu0 %v1457
    %1538 = vmatprep.subr.mxu0 %v1454
    %1539 = vmatpush1.msra.mxu0 %v1453
    %1540 = vmatprep.subr.mxu0 %v1450
    %1541 = vmatpush1.msra.mxu0 %v1449
    %1542 = vmatprep.subr.mxu0 %v1446
    %1543 = vmatpush1.msra.mxu0 %v1445
    %1544 = vmatprep.subr.mxu0 %v1442
    %1545 = vmatpush1.msra.mxu0 %v1441
    %1546 = vmatprep.subr.mxu0 %v1438
    %1547 = vmatpush1.msra.mxu0 %v1437
    %1548 = vmatprep.subr.mxu0 %v1434
    %1549 = vmatpush1.msra.mxu0 %v1433
    %1550 = vmatprep.subr.mxu0 %v1430
    %1551 = vmatpush1.msra.mxu0 %v1429
    %1552 = vmatprep.subr.mxu0 %v1426
    %1553 = vmatpush1.msra.mxu0 %v1425
    %1554 = vmatprep.subr.mxu0 %v1422
    %1555 = vmatpush1.msra.mxu0 %v1421
    %1556 = vmatprep.subr.mxu0 %v1418
    %1557 = vmatpush1.msra.mxu0 %v1417
    %1558 = vmatprep.subr.mxu0 %v1414
    %1559 = vmatpush1.msra.mxu0 %v1413
    %1560 = vmatprep.subr.mxu0 %v1410
    %1561 = vmatpush1.msra.mxu0 %v1409
    %1562 = vmatprep.subr.mxu0 %v1406
    %1563 = vmatpush1.msra.mxu0 %v1405
    %1564 = vmatprep.subr.mxu0 %v1402
    %1565 = vmatpush1.msra.mxu0 %v1401
    %1566 = vmatprep.subr.mxu0 %v1398
    %1567 = vmatpush1.msra.mxu0 %v1397
    %1568 = vmatprep.subr.mxu0 0.0
    %1569 = vmatpush2.msra.mxu0 0.0
    %1570 = vmatprep.subr.mxu0 0.0
    %1571 = vmatpush2.msra.mxu0 0.0
    %1572 = vmatprep.subr.mxu0 0.0
    %1573 = vmatpush2.msra.mxu0 0.0
    %1574 = vmatprep.subr.mxu0 0.0
    %1575 = vmatpush2.msra.mxu0 0.0
    %1576 = vmatprep.subr.mxu0 0.0
    %1577 = vmatpush2.msra.mxu0 0.0
    %1578 = vmatprep.subr.mxu0 0.0
    %1579 = vmatpush2.msra.mxu0 0.0
    %1580 = vmatprep.subr.mxu0 0.0
    %1581 = vmatpush2.msra.mxu0 0.0
    %1582 = vmatprep.subr.mxu0 0.0
    %1583 = vmatpush2.msra.mxu0 0.0
    %1584 = vmatprep.subr.mxu0 0.0
    %1585 = vmatpush2.msra.mxu0 0.0
    %1586 = vmatprep.subr.mxu0 0.0
    %1587 = vmatpush2.msra.mxu0 0.0
    %1588 = vmatprep.subr.mxu0 0.0
    %1589 = vmatpush2.msra.mxu0 0.0
    %1590 = vmatprep.subr.mxu0 0.0
    %1591 = vmatpush2.msra.mxu0 0.0
    %1592 = vmatprep.subr.mxu0 0.0
    %1593 = vmatpush2.msra.mxu0 0.0
    %1594 = vmatprep.subr.mxu0 0.0
    %1595 = vmatpush2.msra.mxu0 0.0
    %1596 = vmatprep.subr.mxu0 0.0
    %1597 = vmatpush2.msra.mxu0 0.0
    %1598 = vmatprep.subr.mxu0 0.0
    %1599 = vmatpush2.msra.mxu0 0.0
    %1600 = vmatprep.mubr.f32.mxu0 0.0
    %1601 = vmatmul.mubr.f32.gmra.mxu0 %v1393
    %v1602 = vpop.f32.mrf.mxu0
    %v1603 = vadd.f32 0.0, %v1602
    %v1604 = vpop.f32.mrf.mxu0
    %v1605 = vadd.f32 0.0, %v1604
    %1606 = vmatprep.mubr.f32.mxu0 0.0
    %1607 = vmatmul.mubr.f32.gmra.mxu0 %v1394
    %v1608 = vpop.f32.mrf.mxu0
    %v1609 = vadd.f32 0.0, %v1608
    %v1610 = vpop.f32.mrf.mxu0
    %v1611 = vadd.f32 0.0, %v1610
    %1612 = vdwg.mxu0
    %v1613 = vtanh.pop %v1526
    %v1614 = vtanh.pop %v1528
    %v1615 = vtanh.pop %v1603
    %v1616 = vtanh.pop %v1605
    %v1617 = vtanh.pop %v1532
    %v1618 = vtanh.pop %v1534
    %v1619 = vtanh.pop %v1609
    %v1620 = vtanh.pop %v1611
    %v1621 = vmul.f32 %v1614, 0.35355338
    %v1622 = vmul.f32 %v1618, 0.35355338
    %1623 = vmatprep.subr.mxu0 0.0
    %1624 = vmatpush1.xpose.msra.mxu0 0.0
    %1625 = vmatprep.subr.mxu0 0.0
    %1626 = vmatpush1.xpose.msra.mxu0 0.0
    %1627 = vmatprep.subr.mxu0 0.0
    %1628 = vmatpush1.xpose.msra.mxu0 0.0
    %1629 = vmatprep.subr.mxu0 0.0
    %1630 = vmatpush1.xpose.msra.mxu0 0.0
    %1631 = vmatprep.subr.mxu0 0.0
    %1632 = vmatpush1.xpose.msra.mxu0 0.0
    %1633 = vmatprep.subr.mxu0 0.0
    %1634 = vmatpush1.xpose.msra.mxu0 0.0
    %1635 = vmatprep.subr.mxu0 0.0
    %1636 = vmatpush1.xpose.msra.mxu0 0.0
    %1637 = vmatprep.subr.mxu0 0.0
    %1638 = vmatpush1.xpose.msra.mxu0 0.0
    %1639 = vmatprep.subr.mxu0 0.0
    %1640 = vmatpush1.xpose.msra.mxu0 0.0
    %1641 = vmatprep.subr.mxu0 0.0
    %1642 = vmatpush1.xpose.msra.mxu0 0.0
    %1643 = vmatprep.subr.mxu0 0.0
    %1644 = vmatpush1.xpose.msra.mxu0 0.0
    %1645 = vmatprep.subr.mxu0 0.0
    %1646 = vmatpush1.xpose.msra.mxu0 0.0
    %1647 = vmatprep.subr.mxu0 0.0
    %1648 = vmatpush1.xpose.msra.mxu0 0.0
    %1649 = vmatprep.subr.mxu0 0.0
    %1650 = vmatpush1.xpose.msra.mxu0 0.0
    %1651 = vmatprep.subr.mxu0 0.0
    %1652 = vmatpush1.xpose.msra.mxu0 %v1617
    %1653 = vmatprep.subr.mxu0 0.0
    %1654 = vmatpush1.xpose.msra.mxu0 %v1613
    %1655 = vmatprep.subr.mxu0 0.0
    %1656 = vmatpush2.xpose.msra.mxu0 0.0
    %1657 = vmatprep.subr.mxu0 0.0
    %1658 = vmatpush2.xpose.msra.mxu0 0.0
    %1659 = vmatprep.subr.mxu0 0.0
    %1660 = vmatpush2.xpose.msra.mxu0 0.0
    %1661 = vmatprep.subr.mxu0 0.0
    %1662 = vmatpush2.xpose.msra.mxu0 0.0
    %1663 = vmatprep.subr.mxu0 0.0
    %1664 = vmatpush2.xpose.msra.mxu0 0.0
    %1665 = vmatprep.subr.mxu0 0.0
    %1666 = vmatpush2.xpose.msra.mxu0 0.0
    %1667 = vmatprep.subr.mxu0 0.0
    %1668 = vmatpush2.xpose.msra.mxu0 0.0
    %1669 = vmatprep.subr.mxu0 0.0
    %1670 = vmatpush2.xpose.msra.mxu0 0.0
    %1671 = vmatprep.subr.mxu0 0.0
    %1672 = vmatpush2.xpose.msra.mxu0 0.0
    %1673 = vmatprep.subr.mxu0 0.0
    %1674 = vmatpush2.xpose.msra.mxu0 0.0
    %1675 = vmatprep.subr.mxu0 0.0
    %1676 = vmatpush2.xpose.msra.mxu0 0.0
    %1677 = vmatprep.subr.mxu0 0.0
    %1678 = vmatpush2.xpose.msra.mxu0 0.0
    %1679 = vmatprep.subr.mxu0 0.0
    %1680 = vmatpush2.xpose.msra.mxu0 0.0
    %1681 = vmatprep.subr.mxu0 0.0
    %1682 = vmatpush2.xpose.msra.mxu0 0.0
    %1683 = vmatprep.subr.mxu0 0.0
    %1684 = vmatpush2.xpose.msra.mxu0 0.0
    %1685 = vmatprep.subr.mxu0 0.0
    %1686 = vmatpush2.xpose.msra.mxu0 0.0
    %1687 = vmatprep.mubr.f32.mxu0 0.0
    %1688 = vmatmul.mubr.f32.gmra.mxu0 %v1621
    %v1689 = vpop.f32.mrf.mxu0
    %v1690 = vadd.f32 0.0, %v1689
    %v1691 = vpop.f32.mrf.mxu0
    %1692 = vmatprep.mubr.f32.mxu0 0.0
    %1693 = vmatmul.mubr.f32.gmra.mxu0 %v1622
    %v1694 = vpop.f32.mrf.mxu0
    %v1695 = vadd.f32 0.0, %v1694
    %v1696 = vpop.f32.mrf.mxu0
    %1697 = vdwg.mxu0
    %v1698 = vmul.f32 %v1690, 1.442695
    %v1699 = vpow.pop %v1698
    %v1700 = vmul.f32 %v1695, 1.442695
    %v1701 = vpow.pop %v1700
    %v1702 = vmul.f32 %v1699, %v91
    %v1703 = vmul.f32 %v1701, %v92
    %v1704 = vsel %vm363, %v1702, 0.0
    %1705 = vadd.xlane.f32.xlu0 %v1704
    %v1706 = vpop.xlane.xlu0 %1705
    %v1707 = vsel %vm363, %v1703, 0.0
    %1708 = vadd.xlane.f32.xlu0 %v1707
    %v1709 = vpop.xlane.xlu0 %1708
    %v1710 = vrcp.pop %v1706
    %v1711 = vrcp.pop %v1709
    %v1712 = vmul.f32 %v1706, %v1710
    %v1713 = vmul.f32 %v1709, %v1711
    %v1714 = vsub.f32 2.0, %v1712
    %v1715 = vsub.f32 2.0, %v1713
    %v1716 = vmul.f32 %v1710, %v1714
    %v1717 = vmul.f32 %v1711, %v1715
    %v1718 = vmul.f32 %v1613, %v1716
    %v1719 = vmul.f32 %v1617, %v1717
    %v1720 = vmul.f32 %v1616, 0.35355338
    %v1721 = vmul.f32 %v1620, 0.35355338
    %1722 = vmatprep.subr.mxu0 0.0
    %1723 = vmatpush1.xpose.msra.mxu0 0.0
    %1724 = vmatprep.subr.mxu0 0.0
    %1725 = vmatpush1.xpose.msra.mxu0 0.0
    %1726 = vmatprep.subr.mxu0 0.0
    %1727 = vmatpush1.xpose.msra.mxu0 0.0
    %1728 = vmatprep.subr.mxu0 0.0
    %1729 = vmatpush1.xpose.msra.mxu0 0.0
    %1730 = vmatprep.subr.mxu0 0.0
    %1731 = vmatpush1.xpose.msra.mxu0 0.0
    %1732 = vmatprep.subr.mxu0 0.0
    %1733 = vmatpush1.xpose.msra.mxu0 0.0
    %1734 = vmatprep.subr.mxu0 0.0
    %1735 = vmatpush1.xpose.msra.mxu0 0.0
    %1736 = vmatprep.subr.mxu0 0.0
    %1737 = vmatpush1.xpose.msra.mxu0 0.0
    %1738 = vmatprep.subr.mxu0 0.0
    %1739 = vmatpush1.xpose.msra.mxu0 0.0
    %1740 = vmatprep.subr.mxu0 0.0
    %1741 = vmatpush1.xpose.msra.mxu0 0.0
    %1742 = vmatprep.subr.mxu0 0.0
    %1743 = vmatpush1.xpose.msra.mxu0 0.0
    %1744 = vmatprep.subr.mxu0 0.0
    %1745 = vmatpush1.xpose.msra.mxu0 0.0
    %1746 = vmatprep.subr.mxu0 0.0
    %1747 = vmatpush1.xpose.msra.mxu0 0.0
    %1748 = vmatprep.subr.mxu0 0.0
    %1749 = vmatpush1.xpose.msra.mxu0 0.0
    %1750 = vmatprep.subr.mxu0 0.0
    %1751 = vmatpush1.xpose.msra.mxu0 %v1619
    %1752 = vmatprep.subr.mxu0 0.0
    %1753 = vmatpush1.xpose.msra.mxu0 %v1615
    %1754 = vmatprep.subr.mxu0 0.0
    %1755 = vmatpush2.xpose.msra.mxu0 0.0
    %1756 = vmatprep.subr.mxu0 0.0
    %1757 = vmatpush2.xpose.msra.mxu0 0.0
    %1758 = vmatprep.subr.mxu0 0.0
    %1759 = vmatpush2.xpose.msra.mxu0 0.0
    %1760 = vmatprep.subr.mxu0 0.0
    %1761 = vmatpush2.xpose.msra.mxu0 0.0
    %1762 = vmatprep.subr.mxu0 0.0
    %1763 = vmatpush2.xpose.msra.mxu0 0.0
    %1764 = vmatprep.subr.mxu0 0.0
    %1765 = vmatpush2.xpose.msra.mxu0 0.0
    %1766 = vmatprep.subr.mxu0 0.0
    %1767 = vmatpush2.xpose.msra.mxu0 0.0
    %1768 = vmatprep.subr.mxu0 0.0
    %1769 = vmatpush2.xpose.msra.mxu0 0.0
    %1770 = vmatprep.subr.mxu0 0.0
    %1771 = vmatpush2.xpose.msra.mxu0 0.0
    %1772 = vmatprep.subr.mxu0 0.0
    %1773 = vmatpush2.xpose.msra.mxu0 0.0
    %1774 = vmatprep.subr.mxu0 0.0
    %1775 = vmatpush2.xpose.msra.mxu0 0.0
    %1776 = vmatprep.subr.mxu0 0.0
    %1777 = vmatpush2.xpose.msra.mxu0 0.0
    %1778 = vmatprep.subr.mxu0 0.0
    %1779 = vmatpush2.xpose.msra.mxu0 0.0
    %1780 = vmatprep.subr.mxu0 0.0
    %1781 = vmatpush2.xpose.msra.mxu0 0.0
    %1782 = vmatprep.subr.mxu0 0.0
    %1783 = vmatpush2.xpose.msra.mxu0 0.0
    %1784 = vmatprep.subr.mxu0 0.0
    %1785 = vmatpush2.xpose.msra.mxu0 0.0
    %1786 = vmatprep.mubr.f32.mxu0 0.0
    %1787 = vmatmul.mubr.f32.gmra.mxu0 %v1720
    %v1788 = vpop.f32.mrf.mxu0
    %v1789 = vadd.f32 0.0, %v1788
    %v1790 = vpop.f32.mrf.mxu0
    %1791 = vmatprep.mubr.f32.mxu0 0.0
    %1792 = vmatmul.mubr.f32.gmra.mxu0 %v1721
    %v1793 = vpop.f32.mrf.mxu0
    %v1794 = vadd.f32 0.0, %v1793
    %v1795 = vpop.f32.mrf.mxu0
    %1796 = vdwg.mxu0
    %v1797 = vmul.f32 %v1789, 1.442695
    %v1798 = vpow.pop %v1797
    %v1799 = vmul.f32 %v1794, 1.442695
    %v1800 = vpow.pop %v1799
    %v1801 = vmul.f32 %v1798, %v91
    %v1802 = vmul.f32 %v1800, %v92
    %v1803 = vsel %vm363, %v1801, 0.0
    %1804 = vadd.xlane.f32.xlu0 %v1803
    %v1805 = vpop.xlane.xlu0 %1804
    %v1806 = vsel %vm363, %v1802, 0.0
    %1807 = vadd.xlane.f32.xlu0 %v1806
    %v1808 = vpop.xlane.xlu0 %1807
    %v1809 = vrcp.pop %v1805
    %v1810 = vrcp.pop %v1808
    %v1811 = vmul.f32 %v1805, %v1809
    %v1812 = vmul.f32 %v1808, %v1810
    %v1813 = vsub.f32 2.0, %v1811
    %v1814 = vsub.f32 2.0, %v1812
    %v1815 = vmul.f32 %v1809, %v1813
    %v1816 = vmul.f32 %v1810, %v1814
    %v1817 = vmul.f32 %v1615, %v1815
    %v1818 = vmul.f32 %v1619, %v1816
    %v1820 = vsel %vm363, %v1801, 0
    %v1823 = vsel %vm363, %v1802, 0
    %1825 = vmatprep.subr.mxu0 0.0
    %1826 = vmatpush1.msra.mxu0 0.0
    %1827 = vmatprep.subr.mxu0 0.0
    %1828 = vmatpush1.msra.mxu0 0.0
    %1829 = vmatprep.subr.mxu0 0.0
    %1830 = vmatpush1.msra.mxu0 0.0
    %1831 = vmatprep.subr.mxu0 0.0
    %1832 = vmatpush1.msra.mxu0 0.0
    %1833 = vmatprep.subr.mxu0 0.0
    %1834 = vmatpush1.msra.mxu0 0.0
    %1835 = vmatprep.subr.mxu0 0.0
    %1836 = vmatpush1.msra.mxu0 0.0
    %1837 = vmatprep.subr.mxu0 0.0
    %1838 = vmatpush1.msra.mxu0 0.0
    %1839 = vmatprep.subr.mxu0 0.0
    %1840 = vmatpush1.msra.mxu0 0.0
    %1841 = vmatprep.subr.mxu0 0.0
    %1842 = vmatpush1.msra.mxu0 0.0
    %1843 = vmatprep.subr.mxu0 0.0
    %1844 = vmatpush1.msra.mxu0 0.0
    %1845 = vmatprep.subr.mxu0 0.0
    %1846 = vmatpush1.msra.mxu0 0.0
    %1847 = vmatprep.subr.mxu0 0.0
    %1848 = vmatpush1.msra.mxu0 0.0
    %1849 = vmatprep.subr.mxu0 0.0
    %1850 = vmatpush1.msra.mxu0 0.0
    %1851 = vmatprep.subr.mxu0 0.0
    %1852 = vmatpush1.msra.mxu0 0.0
    %1853 = vmatprep.subr.mxu0 0.0
    %1854 = vmatpush1.msra.mxu0 %v1818
    %1855 = vmatprep.subr.mxu0 0.0
    %1856 = vmatpush1.msra.mxu0 %v1817
    %1857 = vmatprep.subr.mxu0 0.0
    %1858 = vmatpush2.msra.mxu0 0.0
    %1859 = vmatprep.subr.mxu0 0.0
    %1860 = vmatpush2.msra.mxu0 0.0
    %1861 = vmatprep.subr.mxu0 0.0
    %1862 = vmatpush2.msra.mxu0 0.0
    %1863 = vmatprep.subr.mxu0 0.0
    %1864 = vmatpush2.msra.mxu0 0.0
    %1865 = vmatprep.subr.mxu0 0.0
    %1866 = vmatpush2.msra.mxu0 0.0
    %1867 = vmatprep.subr.mxu0 0.0
    %1868 = vmatpush2.msra.mxu0 0.0
    %1869 = vmatprep.subr.mxu0 0.0
    %1870 = vmatpush2.msra.mxu0 0.0
    %1871 = vmatprep.subr.mxu0 0.0
    %1872 = vmatpush2.msra.mxu0 0.0
    %1873 = vmatprep.subr.mxu0 0.0
    %1874 = vmatpush2.msra.mxu0 0.0
    %1875 = vmatprep.subr.mxu0 0.0
    %1876 = vmatpush2.msra.mxu0 0.0
    %1877 = vmatprep.subr.mxu0 0.0
    %1878 = vmatpush2.msra.mxu0 0.0
    %1879 = vmatprep.subr.mxu0 0.0
    %1880 = vmatpush2.msra.mxu0 0.0
    %1881 = vmatprep.subr.mxu0 0.0
    %1882 = vmatpush2.msra.mxu0 0.0
    %1883 = vmatprep.subr.mxu0 0.0
    %1884 = vmatpush2.msra.mxu0 0.0
    %1885 = vmatprep.subr.mxu0 0.0
    %1886 = vmatpush2.msra.mxu0 0.0
    %1887 = vmatprep.subr.mxu0 0.0
    %1888 = vmatpush2.msra.mxu0 0.0
    %1889 = vmatprep.mubr.f32.mxu0 0.0
    %1890 = vmatmul.mubr.f32.gmra.mxu0 %v1820
    %v1891 = vpop.f32.mrf.mxu0
    %v1892 = vadd.f32 0.0, %v1891
    %v1893 = vpop.f32.mrf.mxu0
    %1894 = vmatprep.mubr.f32.mxu0 0.0
    %1895 = vmatmul.mubr.f32.gmra.mxu0 %v1823
    %v1896 = vpop.f32.mrf.mxu0
    %v1897 = vadd.f32 0.0, %v1896
    %v1898 = vpop.f32.mrf.mxu0
    %1899 = vdwg.mxu0
    %v1901 = vsel %vm363, %v1702, 0
    %v1904 = vsel %vm363, %v1703, 0
    %1906 = vmatprep.subr.mxu0 0.0
    %1907 = vmatpush1.msra.mxu0 0.0
    %1908 = vmatprep.subr.mxu0 0.0
    %1909 = vmatpush1.msra.mxu0 0.0
    %1910 = vmatprep.subr.mxu0 0.0
    %1911 = vmatpush1.msra.mxu0 0.0
    %1912 = vmatprep.subr.mxu0 0.0
    %1913 = vmatpush1.msra.mxu0 0.0
    %1914 = vmatprep.subr.mxu0 0.0
    %1915 = vmatpush1.msra.mxu0 0.0
    %1916 = vmatprep.subr.mxu0 0.0
    %1917 = vmatpush1.msra.mxu0 0.0
    %1918 = vmatprep.subr.mxu0 0.0
    %1919 = vmatpush1.msra.mxu0 0.0
    %1920 = vmatprep.subr.mxu0 0.0
    %1921 = vmatpush1.msra.mxu0 0.0
    %1922 = vmatprep.subr.mxu0 0.0
    %1923 = vmatpush1.msra.mxu0 0.0
    %1924 = vmatprep.subr.mxu0 0.0
    %1925 = vmatpush1.msra.mxu0 0.0
    %1926 = vmatprep.subr.mxu0 0.0
    %1927 = vmatpush1.msra.mxu0 0.0
    %1928 = vmatprep.subr.mxu0 0.0
    %1929 = vmatpush1.msra.mxu0 0.0
    %1930 = vmatprep.subr.mxu0 0.0
    %1931 = vmatpush1.msra.mxu0 0.0
    %1932 = vmatprep.subr.mxu0 0.0
    %1933 = vmatpush1.msra.mxu0 0.0
    %1934 = vmatprep.subr.mxu0 0.0
    %1935 = vmatpush1.msra.mxu0 %v1719
    %1936 = vmatprep.subr.mxu0 0.0
    %1937 = vmatpush1.msra.mxu0 %v1718
    %1938 = vmatprep.subr.mxu0 0.0
    %1939 = vmatpush2.msra.mxu0 0.0
    %1940 = vmatprep.subr.mxu0 0.0
    %1941 = vmatpush2.msra.mxu0 0.0
    %1942 = vmatprep.subr.mxu0 0.0
    %1943 = vmatpush2.msra.mxu0 0.0
    %1944 = vmatprep.subr.mxu0 0.0
    %1945 = vmatpush2.msra.mxu0 0.0
    %1946 = vmatprep.subr.mxu0 0.0
    %1947 = vmatpush2.msra.mxu0 0.0
    %1948 = vmatprep.subr.mxu0 0.0
    %1949 = vmatpush2.msra.mxu0 0.0
    %1950 = vmatprep.subr.mxu0 0.0
    %1951 = vmatpush2.msra.mxu0 0.0
    %1952 = vmatprep.subr.mxu0 0.0
    %1953 = vmatpush2.msra.mxu0 0.0
    %1954 = vmatprep.subr.mxu0 0.0
    %1955 = vmatpush2.msra.mxu0 0.0
    %1956 = vmatprep.subr.mxu0 0.0
    %1957 = vmatpush2.msra.mxu0 0.0
    %1958 = vmatprep.subr.mxu0 0.0
    %1959 = vmatpush2.msra.mxu0 0.0
    %1960 = vmatprep.subr.mxu0 0.0
    %1961 = vmatpush2.msra.mxu0 0.0
    %1962 = vmatprep.subr.mxu0 0.0
    %1963 = vmatpush2.msra.mxu0 0.0
    %1964 = vmatprep.subr.mxu0 0.0
    %1965 = vmatpush2.msra.mxu0 0.0
    %1966 = vmatprep.subr.mxu0 0.0
    %1967 = vmatpush2.msra.mxu0 0.0
    %1968 = vmatprep.subr.mxu0 0.0
    %1969 = vmatpush2.msra.mxu0 0.0
    %1970 = vmatprep.mubr.f32.mxu0 0.0
    %1971 = vmatmul.mubr.f32.gmra.mxu0 %v1901
    %v1972 = vpop.f32.mrf.mxu0
    %v1973 = vadd.f32 %v1892, %v1972
    %v1974 = vpop.f32.mrf.mxu0
    %1975 = vmatprep.mubr.f32.mxu0 0.0
    %1976 = vmatmul.mubr.f32.gmra.mxu0 %v1904
    %v1977 = vpop.f32.mrf.mxu0
    %v1978 = vadd.f32 %v1897, %v1977
    %v1979 = vpop.f32.mrf.mxu0
    %1980 = vdwg.mxu0
    %1981 = vmatprep.subr.mxu0 0.0
    %1982 = vmatpush1.msra.mxu0 0.0
    %1983 = vmatprep.subr.mxu0 0.0
    %1984 = vmatpush1.msra.mxu0 0.0
    %1985 = vmatprep.subr.mxu0 0.0
    %1986 = vmatpush1.msra.mxu0 0.0
    %1987 = vmatprep.subr.mxu0 0.0
    %1988 = vmatpush1.msra.mxu0 0.0
    %1989 = vmatprep.subr.mxu0 0.0
    %1990 = vmatpush1.msra.mxu0 0.0
    %1991 = vmatprep.subr.mxu0 0.0
    %1992 = vmatpush1.msra.mxu0 0.0
    %1993 = vmatprep.subr.mxu0 0.0
    %1994 = vmatpush1.msra.mxu0 0.0
    %1995 = vmatprep.subr.mxu0 0.0
    %1996 = vmatpush1.msra.mxu0 0.0
    %1997 = vmatprep.subr.mxu0 0.0
    %1998 = vmatpush1.msra.mxu0 0.0
    %1999 = vmatprep.subr.mxu0 0.0
    %2000 = vmatpush1.msra.mxu0 0.0
    %2001 = vmatprep.subr.mxu0 0.0
    %2002 = vmatpush1.msra.mxu0 0.0
    %2003 = vmatprep.subr.mxu0 0.0
    %2004 = vmatpush1.msra.mxu0 0.0
    %2005 = vmatprep.subr.mxu0 0.0
    %2006 = vmatpush1.msra.mxu0 0.0
    %2007 = vmatprep.subr.mxu0 0.0
    %2008 = vmatpush1.msra.mxu0 0.0
    %2009 = vmatprep.subr.mxu0 0.0
    %2010 = vmatpush1.msra.mxu0 %v1978
    %2011 = vmatprep.subr.mxu0 0.0
    %2012 = vmatpush1.msra.mxu0 %v1973
    %2013 = vmatprep.subr.mxu0 0.0
    %2014 = vmatpush2.msra.mxu0 0.0
    %2015 = vmatprep.subr.mxu0 0.0
    %2016 = vmatpush2.msra.mxu0 0.0
    %2017 = vmatprep.subr.mxu0 0.0
    %2018 = vmatpush2.msra.mxu0 0.0
    %2019 = vmatprep.subr.mxu0 0.0
    %2020 = vmatpush2.msra.mxu0 0.0
    %2021 = vmatprep.subr.mxu0 0.0
    %2022 = vmatpush2.msra.mxu0 0.0
    %2023 = vmatprep.subr.mxu0 0.0
    %2024 = vmatpush2.msra.mxu0 0.0
    %2025 = vmatprep.subr.mxu0 0.0
    %2026 = vmatpush2.msra.mxu0 0.0
    %2027 = vmatprep.subr.mxu0 0.0
    %2028 = vmatpush2.msra.mxu0 0.0
    %2029 = vmatprep.subr.mxu0 0.0
    %2030 = vmatpush2.msra.mxu0 0.0
    %2031 = vmatprep.subr.mxu0 0.0
    %2032 = vmatpush2.msra.mxu0 0.0
    %2033 = vmatprep.subr.mxu0 0.0
    %2034 = vmatpush2.msra.mxu0 0.0
    %2035 = vmatprep.subr.mxu0 0.0
    %2036 = vmatpush2.msra.mxu0 0.0
    %2037 = vmatprep.subr.mxu0 0.0
    %2038 = vmatpush2.msra.mxu0 0.0
    %2039 = vmatprep.subr.mxu0 0.0
    %2040 = vmatpush2.msra.mxu0 0.0
    %2041 = vmatprep.subr.mxu0 0.0
    %2042 = vmatpush2.msra.mxu0 0.0
    %2043 = vmatprep.subr.mxu0 0.0
    %2044 = vmatpush2.msra.mxu0 0.0
    %2045 = vmatprep.mubr.f32.mxu0 0.0
    %2046 = vmatmul.mubr.f32.gmra.mxu0 %v646
    %v2047 = vpop.f32.mrf.mxu0
    %v2048 = vadd.f32 0.0, %v2047
    %v2049 = vpop.f32.mrf.mxu0
    %2050 = vmatprep.mubr.f32.mxu0 0.0
    %2051 = vmatmul.mubr.f32.gmra.mxu0 %v649
    %v2052 = vpop.f32.mrf.mxu0
    %v2053 = vadd.f32 0.0, %v2052
    %v2054 = vpop.f32.mrf.mxu0
    %2055 = vdwg.mxu0
    %v2056 = vmul.f32 %v2048, 0.5
    %v2057 = vmul.f32 %v2053, 0.5
    %2058 = vst [vmem:[%s5] sm:$0xff] %v2056
    %2059 = vst [vmem:[%s5 + $0x8] sm:$0xff] %v2057
    %2060 = vmatprep.subr.mxu0 0.0
    %2061 = vmatpush1.xpose.msra.mxu0 0.0
    %2062 = vmatprep.subr.mxu0 0.0
    %2063 = vmatpush1.xpose.msra.mxu0 0.0
    %2064 = vmatprep.subr.mxu0 0.0
    %2065 = vmatpush1.xpose.msra.mxu0 0.0
    %2066 = vmatprep.subr.mxu0 0.0
    %2067 = vmatpush1.xpose.msra.mxu0 0.0
    %2068 = vmatprep.subr.mxu0 0.0
    %2069 = vmatpush1.xpose.msra.mxu0 0.0
    %2070 = vmatprep.subr.mxu0 0.0
    %2071 = vmatpush1.xpose.msra.mxu0 0.0
    %2072 = vmatprep.subr.mxu0 0.0
    %2073 = vmatpush1.xpose.msra.mxu0 0.0
    %2074 = vmatprep.subr.mxu0 0.0
    %2075 = vmatpush1.xpose.msra.mxu0 0.0
    %2076 = vmatprep.subr.mxu0 0.0
    %2077 = vmatpush1.xpose.msra.mxu0 0.0
    %2078 = vmatprep.subr.mxu0 0.0
    %2079 = vmatpush1.xpose.msra.mxu0 0.0
    %2080 = vmatprep.subr.mxu0 0.0
    %2081 = vmatpush1.xpose.msra.mxu0 0.0
    %2082 = vmatprep.subr.mxu0 0.0
    %2083 = vmatpush1.xpose.msra.mxu0 0.0
    %2084 = vmatprep.subr.mxu0 0.0
    %2085 = vmatpush1.xpose.msra.mxu0 0.0
    %2086 = vmatprep.subr.mxu0 0.0
    %2087 = vmatpush1.xpose.msra.mxu0 0.0
    %2088 = vmatprep.subr.mxu0 0.0
    %2089 = vmatpush1.xpose.msra.mxu0 %v2057
    %2090 = vmatprep.subr.mxu0 0.0
    %2091 = vmatpush1.xpose.msra.mxu0 %v2056
    %2092 = vmatprep.subr.mxu0 0.0
    %2093 = vmatpush2.xpose.msra.mxu0 0.0
    %2094 = vmatprep.subr.mxu0 0.0
    %2095 = vmatpush2.xpose.msra.mxu0 0.0
    %2096 = vmatprep.subr.mxu0 0.0
    %2097 = vmatpush2.xpose.msra.mxu0 0.0
    %2098 = vmatprep.subr.mxu0 0.0
    %2099 = vmatpush2.xpose.msra.mxu0 0.0
    %2100 = vmatprep.subr.mxu0 0.0
    %2101 = vmatpush2.xpose.msra.mxu0 0.0
    %2102 = vmatprep.subr.mxu0 0.0
    %2103 = vmatpush2.xpose.msra.mxu0 0.0
    %2104 = vmatprep.subr.mxu0 0.0
    %2105 = vmatpush2.xpose.msra.mxu0 0.0
    %2106 = vmatprep.subr.mxu0 0.0
    %2107 = vmatpush2.xpose.msra.mxu0 0.0
    %2108 = vmatprep.subr.mxu0 0.0
    %2109 = vmatpush2.xpose.msra.mxu0 0.0
    %2110 = vmatprep.subr.mxu0 0.0
    %2111 = vmatpush2.xpose.msra.mxu0 0.0
    %2112 = vmatprep.subr.mxu0 0.0
    %2113 = vmatpush2.xpose.msra.mxu0 0.0
    %2114 = vmatprep.subr.mxu0 0.0
    %2115 = vmatpush2.xpose.msra.mxu0 0.0
    %2116 = vmatprep.subr.mxu0 0.0
    %2117 = vmatpush2.xpose.msra.mxu0 0.0
    %2118 = vmatprep.subr.mxu0 0.0
    %2119 = vmatpush2.xpose.msra.mxu0 0.0
    %2120 = vmatprep.subr.mxu0 0.0
    %2121 = vmatpush2.xpose.msra.mxu0 0.0
    %2122 = vmatprep.subr.mxu0 0.0
    %2123 = vmatpush2.xpose.msra.mxu0 0.0
    %2124 = vmatprep.mubr.f32.mxu0 0.0
    %2125 = vmatmul.mubr.f32.gmra.mxu0 %v2056
    %v2126 = vpop.f32.mrf.mxu0
    %v2127 = vadd.f32 0.0, %v2126
    %v2128 = vpop.f32.mrf.mxu0
    %2129 = vmatprep.mubr.f32.mxu0 0.0
    %2130 = vmatmul.mubr.f32.gmra.mxu0 %v2057
    %v2131 = vpop.f32.mrf.mxu0
    %v2132 = vadd.f32 0.0, %v2131
    %v2133 = vpop.f32.mrf.mxu0
    %2134 = vdwg.mxu0
    %v2135 = vxor.u32 %v2127, 2147483648
    %v2136 = vxor.u32 %v2132, 2147483648
    %v2137 = vmul.f32 %v2135, 1.442695
    %v2138 = vpow.pop %v2137
    %v2139 = vmul.f32 %v2136, 1.442695
    %v2140 = vpow.pop %v2139
    %v2141 = vadd.f32 %v2138, 1.0
    %v2142 = vadd.f32 %v2140, 1.0
    %v2143 = vrcp.pop %v2141
    %v2144 = vmul.f32 1.0, %v2143
    %v2145 = vrcp.pop %v2142
    %v2146 = vmul.f32 1.0, %v2145
    %2147 = vst.msk [vmem:[#allocation11] sm:$0xff] %vm363, %v2144
    %2148 = vst.msk [vmem:[#allocation11 + $0x8] sm:$0xff] %vm363, %v2146
    // Predicated region
    $region42: #{igae_encoder.1} parent=1 // pred_check
      _
    $region43: #{igae_encoder.1} parent=1 // pred_check_branch
      %2150 = sbr.rel (0) target = $region45
    $region44: #{igae_encoder.1} parent=1 // pred_region
      _
    $region45: #{igae_encoder.1} parent=1 // pred_fallthru
      _
    // Predicated region
    $region46: #{igae_encoder.1} parent=1 // pred_check
      _
    $region47: #{igae_encoder.1} parent=1 // pred_check_branch
      %2152 = sbr.rel (0) target = $region49
    $region48: #{igae_encoder.1} parent=1 // pred_region
      %s2154 = ssub.s32 256, 256
      %2155 = vsyncadd [#allocation4], %s2154
      %s2156 = sshll.u32 [#allocation11], 4
      %s2157 = int_to_ptr.vmem [resolvable:$true] %s2156
      %2162 = dma.vmem_to_hbm [thread:$0]  %s2157, 256, %s6, [#allocation4], 128, 128, 8
    $region49: #{igae_encoder.1} parent=1 // pred_fallthru
      _
    // Predicated region
    $region50: #{igae_encoder.1} parent=1 // pred_check
      _
    $region51: #{igae_encoder.1} parent=1 // pred_check_branch
      %2164 = sbr.rel (0) target = $region53
    $region52: #{igae_encoder.1} parent=1 // pred_region
      _
    $region53: #{igae_encoder.1} parent=1 // pred_fallthru
      _
    // Predicated region
    $region54: #{igae_encoder.1} parent=1 // pred_check
      _
    $region55: #{igae_encoder.1} parent=1 // pred_check_branch
      %2166 = sbr.rel (0) target = $region57
    $region56: #{igae_encoder.1} parent=1 // pred_region
      %2167 = dma.done [#allocation4], 256
    $region57: #{igae_encoder.1} parent=1 // pred_fallthru
      _
    %2168 = vsyncpa [#allocation3], 1
    %2169 = vsyncpa [#allocation6], 1
    %2170 = vsyncpa [#allocation9], 1
    %2171 = vsyncpa [#allocation4], 1

</llo_original>
